<compile_context>
chip_gen: v5e
topology: v5e:2x2
jax: 0.10.0
libtpu: 0.0.40
codegen_flags: <defaults>
</compile_context>

<pallas_src>
import functools
import math

import numpy as np
import jax
import jax.numpy as jnp
from jax.experimental import pallas as pl
from jax.experimental.pallas import tpu as pltpu

GN_GROUPS = 4
GN_EPS = 1e-5
_DOT_DTYPE = jnp.bfloat16   # MXU-native input dtype; accumulation stays f32.


# ---------------------------------------------------------------------------
# Host-side glue: adaptive-avg-pool matrix (PSPModule) and group one-hot.
# ---------------------------------------------------------------------------
def _adaptive_pool_matrix_1d(dim, size):
    """(size, dim) matrix implementing torch AdaptiveAvgPool1d(size) bins."""
    P = np.zeros((size, dim), np.float32)
    for i in range(size):
        start = (i * dim) // size
        end = math.ceil((i + 1) * dim / size)
        P[i, start:end] = 1.0 / (end - start)
    return P


def psp_pool_matrix(H, W, D, sizes):
    """(S, H*W*D) pooling matrix, S = sum(s**3), matching PSPModule cat order."""
    mats = []
    for s in sizes:
        Ph = _adaptive_pool_matrix_1d(H, s)
        Pw = _adaptive_pool_matrix_1d(W, s)
        Pd = _adaptive_pool_matrix_1d(D, s)
        mats.append(np.kron(np.kron(Ph, Pw), Pd))
    return np.concatenate(mats, axis=0).astype(np.float32)


def group_onehot(channels, groups):
    """(channels, groups) one-hot group-assignment matrix for GroupNorm stats."""
    M = np.zeros((channels, groups), np.float32)
    cg = channels // groups
    for c in range(channels):
        M[c, c // cg] = 1.0
    return M


def _tpu_kind():
    try:
        return jax.devices()[0].device_kind.lower()
    except Exception:
        return ""


def _pick_tile_n(N, per_n_bytes, budget_bytes, cap=8192):
    """Largest multiple of 128 dividing N whose streamed footprint fits the budget."""
    max_tn = min(N, cap, max(128, budget_bytes // max(per_n_bytes, 1)))
    best = None
    t = 128
    while t <= max_tn:
        if N % t == 0:
            best = t
        t += 128
    if best is None:
        # No 128-multiple divisor found (or N < 128): fall back to the whole extent.
        best = N
    return best


# ---------------------------------------------------------------------------
# Pallas kernel: grid = (batch, phase, n_tile).  Channels on sublanes, positions on lanes.
# ---------------------------------------------------------------------------
def _attn_kernel(x_ref, p_ref, m_ref, wk_ref, wkv_ref, bkv_ref, gamma_ref, beta_ref,
                 ww_ref, bw_ref, out_ref,
                 s12_ref, gna_ref, gnb_ref, kpsp_ref, vpsp_ref,
                 *, kc, tn, inv_cnt, key_scale, p_resident, exp_dtype):
    phase = pl.program_id(1)
    n_idx = pl.program_id(2)

    x = x_ref[0]            # (Cin, tn)  bf16

    def p_tile():
        # (S, tn) bf16 slice of the pooling matrix for this spatial tile.
        if p_resident:
            if tn % 128 == 0:
                start = pl.multiple_of(n_idx * tn, 128)
            else:
                start = n_idx * tn
            return p_ref[:, pl.ds(start, tn)]
        return p_ref[...]

    def project_feat():
        # shared f_key / f_query: 1x1x1 conv -> GroupNorm(4) (precomputed scale/shift) -> ReLU
        kq = jnp.dot(wk_ref[...], x, preferred_element_type=jnp.float32) + bkv_ref[:kc]
        return jnp.maximum(kq * gna_ref[...] + gnb_ref[...], 0.0)        # (Kc, tn) f32

    # ------------- phase 0: fused K/V projection, GN stats, pooled values ---------------
    @pl.when(phase == 0)
    def _phase0():
        @pl.when(n_idx == 0)
        def _init():
            s12_ref[...] = jnp.zeros_like(s12_ref)
            kpsp_ref[...] = jnp.zeros_like(kpsp_ref)
            vpsp_ref[...] = jnp.zeros_like(vpsp_ref)

        kv = jnp.dot(wkv_ref[...], x, preferred_element_type=jnp.float32) + bkv_ref[...]
        kq = kv[:kc]                                                      # (Kc, tn) f32
        val = kv[kc:]                                                     # (Vc, tn) f32

        # GroupNorm statistics on the (idle) MXU: [kq; kq*kq] @ ones(tn, 1).
        # f32 inputs keep variance (E[x^2]-E[x]^2) precision; this matmul is tiny.
        stacked = jnp.concatenate([kq, kq * kq], axis=0)                  # (2*Kc, tn)
        ones_col = jnp.ones((tn, 1), jnp.float32)
        s12_ref[...] += jnp.dot(stacked, ones_col, preferred_element_type=jnp.float32)

        # Pooled values with an extra all-ones row: P rows each sum to 1 over the full N,
        # so the extra row accumulates to ones(1, S) and later yields the softmax denominator
        # for free out of the ctx matmul.
        p_t = p_tile()                                                    # (S, tn) bf16
        ones_row = jnp.ones((1, tn), jnp.float32)
        val_ext = jnp.concatenate([val, ones_row], axis=0).astype(p_t.dtype)  # (Vc+1, tn)
        vpsp_ref[...] += jax.lax.dot_general(
            val_ext, p_t, (((1,), (1,)), ((), ())),
            preferred_element_type=jnp.float32)                           # (Vc+1, S)

    # ------------- phase 1: finalize GroupNorm, accumulate pooled keys ------------------
    @pl.when(phase == 1)
    def _phase1():
        @pl.when(n_idx == 0)
        def _finalize_gn():
            A = m_ref[...]                                                # (Kc, G) one-hot
            s1 = s12_ref[:kc]                                             # (Kc, 1)
            s2 = s12_ref[kc:]
            gmean = jnp.sum(A * s1, axis=0, keepdims=True) * inv_cnt      # (1, G)
            gmsq = jnp.sum(A * s2, axis=0, keepdims=True) * inv_cnt
            # clamp: E[x^2] - E[x]^2 can cancel slightly negative in f32
            gvar = jnp.maximum(gmsq - gmean * gmean, 0.0)
            mean_c = jnp.sum(A * gmean, axis=1, keepdims=True)            # (Kc, 1)
            var_c = jnp.sum(A * gvar, axis=1, keepdims=True)
            sc = jax.lax.rsqrt(var_c + GN_EPS) * gamma_ref[...]
            gna_ref[...] = sc
            gnb_ref[...] = beta_ref[...] - mean_c * sc

        feat = project_feat()                                             # (Kc, tn) f32
        p_t = p_tile()
        kpsp_ref[...] += jax.lax.dot_general(
            feat.astype(p_t.dtype), p_t, (((1,), (1,)), ((), ())),
            preferred_element_type=jnp.float32)                           # (Kc, S)

    # ------------- phase 2: attention over pooled K/V, output 1x1x1 conv ----------------
    @pl.when(phase == 2)
    def _phase2():
        @pl.when(n_idx == 0)
        def _fold_scale():
            kpsp_ref[...] *= key_scale        # fold key_channels**-0.5 into pooled keys

        q = project_feat().astype(_DOT_DTYPE)                             # (Kc, tn)
        k_sc = kpsp_ref[...].astype(_DOT_DTYPE)                           # (Kc, S)
        sim = jax.lax.dot_general(k_sc, q, (((0,), (0,)), ((), ())),
                                  preferred_element_type=jnp.float32)     # (S, tn)
        mx = jnp.max(sim, axis=0, keepdims=True)                          # (1, tn)
        # bf16 exp on v6e/v7x (EUP ~2x throughput); f32 on v5e / other.
        e = jnp.exp((sim - mx).astype(exp_dtype)).astype(_DOT_DTYPE)      # (S, tn)
        ctx_ext = jnp.dot(vpsp_ref[...].astype(_DOT_DTYPE), e,
                          preferred_element_type=jnp.float32)             # (Vc+1, tn)
        vc = vpsp_ref.shape[0] - 1
        ctx = ctx_ext[:vc] * pl.reciprocal(ctx_ext[vc:], approx=True)     # (Vc, tn)
        out = jnp.dot(ww_ref[...], ctx.astype(_DOT_DTYPE),
                      preferred_element_type=jnp.float32) + bw_ref[...]   # (Co, tn)
        out_ref[0] = out.astype(out_ref.dtype)


# ---------------------------------------------------------------------------
# Wrapper
# ---------------------------------------------------------------------------
def self_attention_block_3d(x, params, psp_sizes, tile_n=None, p_resident=None):
    """x: (B, Cin, H, W, D) float32 (PyTorch NCDHW). Returns (B, Cout, H, W, D) float32."""
    b, cin, H, W, D = x.shape
    N = H * W * D
    wk, bk, gamma, beta = params["wk"], params["bk"], params["gamma"], params["beta"]
    wv, bv, ww, bw = params["wv"], params["bv"], params["ww"], params["bw"]
    Kc, Vc, Co = wk.shape[1], wv.shape[1], ww.shape[1]
    G = GN_GROUPS
    assert Kc % G == 0, "GroupNorm(4, key_channels) requires key_channels % 4 == 0"

    P_np = psp_pool_matrix(H, W, D, psp_sizes)                           # (S, N) f32
    S = P_np.shape[0]

    # ---- generation-aware knobs -------------------------------------------------------
    kind = _tpu_kind()
    is_v5 = "v5" in kind
    is_v7 = ("v7" in kind) or ("7x" in kind)
    is_v6 = "v6" in kind
    exp_dtype = jnp.bfloat16 if (is_v6 or is_v7) else jnp.float32
    n_buf = 3 if is_v5 else 2           # deeper pipeline hides DMA latency on v5e
    vmem_cap = (48 << 20) if is_v7 else (100 << 20)   # v7x: 64 MiB physical, leave headroom

    # ---- VMEM budgeting: resident P vs streamed, then tile size -----------------------
    p_bytes = S * N * 2                                                   # bf16
    if p_resident is None:
        # budget 2x in case the pipeline keeps two buffers for the constant-index block
        p_resident = (2 * p_bytes) <= (vmem_cap // 2)
    scratch_bytes = 4 * (2 * Kc + Kc + Kc + Kc * S + (Vc + 1) * S)
    per_n_bytes = n_buf * (cin * 2 + Co * 4) + (0 if p_resident else n_buf * S * 2)
    tile_budget = vmem_cap - (2 * p_bytes if p_resident else 0) - scratch_bytes - (8 << 20)
    if tile_n is None:
        tn = _pick_tile_n(N, per_n_bytes, max(tile_budget, 128 * per_n_bytes))
    else:
        tn = tile_n
    assert N % tn == 0, "spatial size must be divisible by the N tile"
    nt = N // tn

    # ---- host-side parameter packing ---------------------------------------------------
    P = jnp.asarray(P_np).astype(_DOT_DTYPE)                              # (S, N)
    M = jnp.asarray(group_onehot(Kc, G))                                  # (Kc, G) f32

    # Channels-first layout: positions (multiple of 128) on lanes, channels on sublanes.
    # NCDHW is already channel-major, so this is a pure reshape (no transpose).
    x_flat = x.reshape(b, cin, N).astype(_DOT_DTYPE)

    wk_t = wk.T.astype(_DOT_DTYPE)                                        # (Kc, Cin)
    wkv_t = jnp.concatenate([wk.T, wv.T], axis=0).astype(_DOT_DTYPE)      # (Kc+Vc, Cin)
    bkv = jnp.concatenate([bk.reshape(Kc, 1), bv.reshape(Vc, 1)], axis=0).astype(jnp.float32)
    ww_t = ww.T.astype(_DOT_DTYPE)                                        # (Co, Vc)
    bw_c = bw.reshape(Co, 1).astype(jnp.float32)
    gamma_c = gamma.reshape(Kc, 1).astype(jnp.float32)
    beta_c = beta.reshape(Kc, 1).astype(jnp.float32)

    kernel = functools.partial(
        _attn_kernel, kc=Kc, tn=tn,
        inv_cnt=1.0 / float(N * (Kc // G)),
        key_scale=float(Kc) ** -0.5,
        p_resident=bool(p_resident),
        exp_dtype=exp_dtype)

    # ---- advisory cost estimate + VMEM limit -------------------------------------------
    flops = b * (2 * N * cin * (Kc + Vc)        # phase 0 fused projection
                 + 2 * N * (2 * Kc)             # GN stats matmul
                 + 2 * N * S * (Vc + 1)         # pooled V (+ones row)
                 + 2 * 2 * N * cin * Kc         # phase 1/2 key/query re-projection
                 + 2 * N * S * Kc               # pooled K
                 + 2 * N * S * Kc               # sim
                 + 2 * N * S * (Vc + 1)         # ctx (+denom row)
                 + 2 * N * Vc * Co)             # output conv
    transcendentals = b * N * (S + 1)
    p_read_bytes = (S * N * 2) if p_resident else (2 * b * S * N * 2)     # once vs 2x per batch
    bytes_accessed = int(3 * b * N * cin * 2 + p_read_bytes + b * N * Co * 4
                         + (2 * Kc + Vc) * cin * 2 + Co * Vc * 2
                         + (Kc + Vc + 3 * Kc + Co) * 4)
    est_vmem = ((2 * p_bytes if p_resident else 0)
                + per_n_bytes * tn + scratch_bytes + (4 << 20))
    vmem_limit = int(min(vmem_cap, max(32 << 20, est_vmem)))

    # ---- BlockSpecs ---------------------------------------------------------------------
    def _maybe_buffered(shape, index_map):
        if is_v5:
            return pl.BlockSpec(shape, index_map, pipeline_mode=pl.Buffered(3))
        return pl.BlockSpec(shape, index_map)

    # x: streamed (Cin, tn) slices; re-read once per phase (recomputing kq is cheaper than
    # staging it through HBM).
    x_spec = _maybe_buffered((1, cin, tn), lambda bi, p, n: (bi, 0, n))

    if p_resident:
        # P resident in VMEM for the whole call (constant block index -> single DMA),
        # sliced per tile inside the kernel.
        p_spec = pl.BlockSpec((S, N), lambda bi, p, n: (0, 0))
    else:
        # Fallback for very large N: stream (S, tn) slices in phases 0/1, park on block 0
        # during phase 2.
        p_spec = _maybe_buffered((S, tn), lambda bi, p, n: (0, jnp.where(p == 2, 0, n)))

    # Output block index is constant during phases 0/1 so untouched tiles are not written
    # back; each block is flushed exactly once, right after its phase-2 write.
    out_spec = pl.BlockSpec((1, Co, tn), lambda bi, p, n: (bi, 0, jnp.where(p == 2, n, 0)))

    out_flat = pl.pallas_call(
        kernel,
        out_shape=jax.ShapeDtypeStruct((b, Co, N), jnp.float32),
        grid=(b, 3, nt),
        in_specs=[
            x_spec,
            p_spec,
            pl.BlockSpec((Kc, G), lambda bi, p, n: (0, 0)),           # group one-hot
            pl.BlockSpec((Kc, cin), lambda bi, p, n: (0, 0)),         # wk (transposed, un-fused)
            pl.BlockSpec((Kc + Vc, cin), lambda bi, p, n: (0, 0)),    # fused wk|wv (transposed)
            pl.BlockSpec((Kc + Vc, 1), lambda bi, p, n: (0, 0)),      # fused bk|bv
            pl.BlockSpec((Kc, 1), lambda bi, p, n: (0, 0)),           # GN gamma
            pl.BlockSpec((Kc, 1), lambda bi, p, n: (0, 0)),           # GN beta
            pl.BlockSpec((Co, Vc), lambda bi, p, n: (0, 0)),          # W (transposed)
            pl.BlockSpec((Co, 1), lambda bi, p, n: (0, 0)),           # W bias
        ],
        out_specs=out_spec,
        scratch_shapes=[
            pltpu.VMEM((2 * Kc, 1), jnp.float32),   # [sum(kq); sum(kq^2)] per channel
            pltpu.VMEM((Kc, 1), jnp.float32),       # GN scale per channel
            pltpu.VMEM((Kc, 1), jnp.float32),       # GN shift per channel
            pltpu.VMEM((Kc, S), jnp.float32),       # pooled keys
            pltpu.VMEM((Vc + 1, S), jnp.float32),   # pooled values + ones row (denominator)
        ],
        compiler_params=pltpu.CompilerParams(
            dimension_semantics=("parallel", "arbitrary", "arbitrary"),
            vmem_limit_bytes=vmem_limit),
        cost_estimate=pl.CostEstimate(flops=flops, transcendentals=transcendentals,
                                      bytes_accessed=bytes_accessed),
    )(x_flat, P, M, wk_t, wkv_t, bkv, gamma_c, beta_c, ww_t, bw_c)

    return out_flat.reshape(b, Co, H, W, D)


# ---------------------------------------------------------------------------
# Pure-JAX reference (f32, same math, for correctness check)
# ---------------------------------------------------------------------------
def reference(x, params, psp_sizes):
    b, cin, H, W, D = x.shape
    N = H * W * D
    wk, bk, gamma, beta = params["wk"], params["bk"], params["gamma"], params["beta"]
    wv, bv, ww, bw = params["wv"], params["bv"], params["ww"], params["bw"]
    Kc = wk.shape[1]
    P = jnp.asarray(psp_pool_matrix(H, W, D, psp_sizes))
    x_flat = jnp.transpose(x, (0, 2, 3, 4, 1)).reshape(b, N, cin)

    def per_batch(xb):
        kq = xb @ wk + bk
        cg = Kc // GN_GROUPS
        kqg = kq.reshape(N, GN_GROUPS, cg)
        mean = kqg.mean(axis=(0, 2), keepdims=True)
        var = ((kqg - mean) ** 2).mean(axis=(0, 2), keepdims=True)
        feat = ((kqg - mean) / jnp.sqrt(var + GN_EPS)).reshape(N, Kc)
        feat = jnp.maximum(feat * gamma + beta, 0.0)
        val = xb @ wv + bv
        key_psp = P @ feat
        val_psp = P @ val
        sim = (feat @ key_psp.T) * (Kc ** -0.5)
        attn = jax.nn.softmax(sim, axis=-1)
        ctx = attn @ val_psp
        return ctx @ ww + bw

    out_flat = jax.vmap(per_batch)(x_flat)
    Co = ww.shape[1]
    return jnp.transpose(out_flat.reshape(b, H, W, D, Co), (0, 4, 1, 2, 3))


# ---------------------------------------------------------------------------
# Main
# ---------------------------------------------------------------------------
if __name__ == "__main__":
    key = jax.random.PRNGKey(0)
    ks = jax.random.split(key, 8)

    # in_channels=4, key_channels=8, value_channels=8, out_channels=4,
    # spatial 8x8x8 (N=512), psp_size=(1, 2, 4) -> S = 1 + 8 + 64 = 73
    b, Cin, H, W, D = 2, 4, 8, 8, 8
    Kc, Vc, Co = 8, 8, 4
    psp_sizes = (1, 2, 4)

    x = jax.random.normal(ks[0], (b, Cin, H, W, D), jnp.float32)

    params = {
        "wk": jax.random.normal(ks[1], (Cin, Kc), jnp.float32) * 0.5,   # f_key/f_query conv
        "bk": jax.random.normal(ks[2], (1, Kc), jnp.float32) * 0.1,
        "gamma": jnp.ones((1, Kc), jnp.float32),                        # GroupNorm affine defaults
        "beta": jnp.zeros((1, Kc), jnp.float32),
        "wv": jax.random.normal(ks[3], (Cin, Vc), jnp.float32) * 0.5,   # f_value conv
        "bv": jax.random.normal(ks[4], (1, Vc), jnp.float32) * 0.1,
        # NOTE: PyTorch __init__ zero-inits W (weight & bias); random values are used here
        # so the kernel output is non-trivial. Set to zeros to match the zero-init exactly.
        "ww": jax.random.normal(ks[5], (Vc, Co), jnp.float32) * 0.5,
        "bw": jax.random.normal(ks[6], (1, Co), jnp.float32) * 0.1,
    }

    ref = jax.block_until_ready(reference(x, params, psp_sizes))

    # (a) forced small tile -> 4 spatial tiles: exercises cross-tile accumulation + resident P.
    out_a = jax.block_until_ready(self_attention_block_3d(x, params, psp_sizes, tile_n=128))
    # (b) automatic tile sizing (collapses to a single tile here).
    out_b = jax.block_until_ready(self_attention_block_3d(x, params, psp_sizes))
    # (c) streamed-P fallback path (used when P is too large to keep VMEM-resident).
    out_c = jax.block_until_ready(
        self_attention_block_3d(x, params, psp_sizes, tile_n=128, p_resident=False))

    for out in (out_a, out_b, out_c):
        assert out.shape == (b, Co, H, W, D)
        # bf16 MXU inputs (f32 accumulation) => slightly looser tolerance than pure f32.
        np.testing.assert_allclose(np.asarray(out), np.asarray(ref), rtol=2e-2, atol=2e-2)

    print("KERNEL_OK")
</pallas_src>

<mosaic_0001>
module attributes {stable_mosaic.version = 11 : i64} {
  func.func @_attn_kernel(%arg0: i32, %arg1: i32, %arg2: i32, %arg3: memref<1x4x128xbf16, #tpu.memory_space<vmem>>, %arg4: memref<73x512xbf16, #tpu.memory_space<vmem>>, %arg5: memref<8x4xf32, #tpu.memory_space<vmem>>, %arg6: memref<8x4xbf16, #tpu.memory_space<vmem>>, %arg7: memref<16x4xbf16, #tpu.memory_space<vmem>>, %arg8: memref<16x1xf32, #tpu.memory_space<vmem>>, %arg9: memref<8x1xf32, #tpu.memory_space<vmem>>, %arg10: memref<8x1xf32, #tpu.memory_space<vmem>>, %arg11: memref<4x8xbf16, #tpu.memory_space<vmem>>, %arg12: memref<4x1xf32, #tpu.memory_space<vmem>>, %arg13: memref<1x4x128xf32, #tpu.memory_space<vmem>>, %arg14: memref<16x1xf32, #tpu.memory_space<vmem>>, %arg15: memref<8x1xf32, #tpu.memory_space<vmem>>, %arg16: memref<8x1xf32, #tpu.memory_space<vmem>>, %arg17: memref<8x73xf32, #tpu.memory_space<vmem>>, %arg18: memref<9x73xf32, #tpu.memory_space<vmem>>) attributes {dimension_semantics = [#tpu.dimension_semantics<parallel>, #tpu.dimension_semantics<arbitrary>, #tpu.dimension_semantics<arbitrary>], iteration_bounds = array<i64: 2, 3, 4>, scalar_prefetch = 0 : i64, scratch_operands = 5 : i64, tpu.core_type = #tpu.core_type<tc>, window_params = [{transform_indices = @transform_0, window_bounds = array<i64: 1, 4, 128>}, {pipeline_mode = #tpu.pipeline_mode<synchronous>, transform_indices = @transform_1, window_bounds = array<i64: 73, 512>}, {pipeline_mode = #tpu.pipeline_mode<synchronous>, transform_indices = @transform_2, window_bounds = array<i64: 8, 4>}, {pipeline_mode = #tpu.pipeline_mode<synchronous>, transform_indices = @transform_3, window_bounds = array<i64: 8, 4>}, {pipeline_mode = #tpu.pipeline_mode<synchronous>, transform_indices = @transform_4, window_bounds = array<i64: 16, 4>}, {pipeline_mode = #tpu.pipeline_mode<synchronous>, transform_indices = @transform_5, window_bounds = array<i64: 16, 1>}, {pipeline_mode = #tpu.pipeline_mode<synchronous>, transform_indices = @transform_6, window_bounds = array<i64: 8, 1>}, {pipeline_mode = #tpu.pipeline_mode<synchronous>, transform_indices = @transform_7, window_bounds = array<i64: 8, 1>}, {pipeline_mode = #tpu.pipeline_mode<synchronous>, transform_indices = @transform_8, window_bounds = array<i64: 4, 8>}, {pipeline_mode = #tpu.pipeline_mode<synchronous>, transform_indices = @transform_9, window_bounds = array<i64: 4, 1>}, {transform_indices = @transform_10, window_bounds = array<i64: 1, 4, 128>}]} {
    %c0 = arith.constant 0 : index
    %c0_0 = arith.constant 0 : index
    %c0_1 = arith.constant 0 : index
    %0 = vector.load %arg3[%c0, %c0_0, %c0_1] : memref<1x4x128xbf16, #tpu.memory_space<vmem>>, vector<1x4x128xbf16>
    %1 = vector.shape_cast %0 : vector<1x4x128xbf16> to vector<4x128xbf16>
    %c0_i32 = arith.constant 0 : i32
    %2 = arith.cmpi eq, %arg1, %c0_i32 : i32
    %3 = arith.extui %2 : i1 to i32
    %c0_i32_2 = arith.constant 0 : i32
    %4 = arith.cmpi ne, %3, %c0_i32_2 : i32
    scf.if %4 {
      %c0_i32_5 = arith.constant 0 : i32
      %11 = arith.cmpi eq, %arg2, %c0_i32_5 : i32
      %12 = arith.extui %11 : i1 to i32
      %c0_i32_6 = arith.constant 0 : i32
      %13 = arith.cmpi ne, %12, %c0_i32_6 : i32
      scf.if %13 {
        %cst_24 = arith.constant 0.000000e+00 : f32
        %39 = vector.broadcast %cst_24 : f32 to vector<16x1xf32>
        %c0_25 = arith.constant 0 : index
        %c0_26 = arith.constant 0 : index
        %40 = vector.load %arg14[%c0_25, %c0_26] : memref<16x1xf32, #tpu.memory_space<vmem>>, vector<16x1xf32>
        tpu.vector_store %arg14[%c0_25, %c0_26], %39 {strides = array<i32>} : memref<16x1xf32, #tpu.memory_space<vmem>>, vector<16x1xf32>,
        %cst_27 = arith.constant 0.000000e+00 : f32
        %41 = vector.broadcast %cst_27 : f32 to vector<8x73xf32>
        %c0_28 = arith.constant 0 : index
        %c0_29 = arith.constant 0 : index
        %42 = vector.load %arg17[%c0_28, %c0_29] : memref<8x73xf32, #tpu.memory_space<vmem>>, vector<8x73xf32>
        tpu.vector_store %arg17[%c0_28, %c0_29], %41 {strides = array<i32>} : memref<8x73xf32, #tpu.memory_space<vmem>>, vector<8x73xf32>,
        %cst_30 = arith.constant 0.000000e+00 : f32
        %43 = vector.broadcast %cst_30 : f32 to vector<9x73xf32>
        %c0_31 = arith.constant 0 : index
        %c0_32 = arith.constant 0 : index
        %44 = vector.load %arg18[%c0_31, %c0_32] : memref<9x73xf32, #tpu.memory_space<vmem>>, vector<9x73xf32>
        tpu.vector_store %arg18[%c0_31, %c0_32], %43 {strides = array<i32>} : memref<9x73xf32, #tpu.memory_space<vmem>>, vector<9x73xf32>,
      } else {
      }
      %c0_7 = arith.constant 0 : index
      %c0_8 = arith.constant 0 : index
      %14 = vector.load %arg7[%c0_7, %c0_8] : memref<16x4xbf16, #tpu.memory_space<vmem>>, vector<16x4xbf16>
      %cst = arith.constant dense<0.000000e+00> : vector<16x128xf32>
      %15 = tpu.matmul %14, %1, %cst {dimension_numbers = #tpu.dot_dimension_numbers<[1], [0], [0], [1], [0, 0, 1, 1], [], []>} : vector<16x4xbf16>, vector<4x128xbf16>, vector<16x128xf32> -> vector<16x128xf32>
      %c0_9 = arith.constant 0 : index
      %c0_10 = arith.constant 0 : index
      %16 = vector.load %arg8[%c0_9, %c0_10] : memref<16x1xf32, #tpu.memory_space<vmem>>, vector<16x1xf32>
      %17 = vector.broadcast %16 : vector<16x1xf32> to vector<16x128xf32>
      %18 = arith.addf %15, %17 : vector<16x128xf32>
      %19 = vector.extract_strided_slice %18 {offsets = [0, 0], sizes = [8, 128], strides = [1, 1]} : vector<16x128xf32> to vector<8x128xf32>
      %20 = vector.extract_strided_slice %18 {offsets = [8, 0], sizes = [8, 128], strides = [1, 1]} : vector<16x128xf32> to vector<8x128xf32>
      %21 = arith.mulf %19, %19 : vector<8x128xf32>
      %22 = tpu.concatenate %19, %21 in 0 : vector<8x128xf32>, vector<8x128xf32> -> vector<16x128xf32>
      %cst_11 = arith.constant 1.000000e+00 : f32
      %23 = vector.broadcast %cst_11 : f32 to vector<128x1xf32>
      %c0_12 = arith.constant 0 : index
      %c0_13 = arith.constant 0 : index
      %24 = vector.load %arg14[%c0_12, %c0_13] : memref<16x1xf32, #tpu.memory_space<vmem>>, vector<16x1xf32>
      %cst_14 = arith.constant dense<0.000000e+00> : vector<16x1xf32>
      %25 = tpu.matmul %22, %23, %cst_14 {dimension_numbers = #tpu.dot_dimension_numbers<[1], [0], [0], [1], [0, 0, 1, 1], [], []>} : vector<16x128xf32>, vector<128x1xf32>, vector<16x1xf32> -> vector<16x1xf32>
      %26 = arith.addf %24, %25 : vector<16x1xf32>
      %c0_15 = arith.constant 0 : index
      %c0_16 = arith.constant 0 : index
      %27 = vector.load %arg14[%c0_15, %c0_16] : memref<16x1xf32, #tpu.memory_space<vmem>>, vector<16x1xf32>
      tpu.vector_store %arg14[%c0_15, %c0_16], %26 {strides = array<i32>} : memref<16x1xf32, #tpu.memory_space<vmem>>, vector<16x1xf32>,
      %c128_i32 = arith.constant 128 : i32
      %28 = arith.muli %arg2, %c128_i32 : i32
      %29 = tpu.assume_multiple %28, 128 : i32
      %c0_17 = arith.constant 0 : index
      %30 = arith.index_cast %29 : i32 to index
      %31 = vector.load %arg4[%c0_17, %30] : memref<73x512xbf16, #tpu.memory_space<vmem>>, vector<73x128xbf16>
      %cst_18 = arith.constant 1.000000e+00 : f32
      %32 = vector.broadcast %cst_18 : f32 to vector<1x128xf32>
      %33 = tpu.concatenate %20, %32 in 0 : vector<8x128xf32>, vector<1x128xf32> -> vector<9x128xf32>
      %34 = arith.truncf %33 : vector<9x128xf32> to vector<9x128xbf16>
      %c0_19 = arith.constant 0 : index
      %c0_20 = arith.constant 0 : index
      %35 = vector.load %arg18[%c0_19, %c0_20] : memref<9x73xf32, #tpu.memory_space<vmem>>, vector<9x73xf32>
      %cst_21 = arith.constant dense<0.000000e+00> : vector<9x73xf32>
      %36 = tpu.matmul %34, %31, %cst_21 {dimension_numbers = #tpu.dot_dimension_numbers<[1], [1], [0], [0], [0, 0, 1, 0], [], []>} : vector<9x128xbf16>, vector<73x128xbf16>, vector<9x73xf32> -> vector<9x73xf32>
      %37 = arith.addf %35, %36 : vector<9x73xf32>
      %c0_22 = arith.constant 0 : index
      %c0_23 = arith.constant 0 : index
      %38 = vector.load %arg18[%c0_22, %c0_23] : memref<9x73xf32, #tpu.memory_space<vmem>>, vector<9x73xf32>
      tpu.vector_store %arg18[%c0_22, %c0_23], %37 {strides = array<i32>} : memref<9x73xf32, #tpu.memory_space<vmem>>, vector<9x73xf32>,
    } else {
    }
    %c1_i32 = arith.constant 1 : i32
    %5 = arith.cmpi eq, %arg1, %c1_i32 : i32
    %6 = arith.extui %5 : i1 to i32
    %c0_i32_3 = arith.constant 0 : i32
    %7 = arith.cmpi ne, %6, %c0_i32_3 : i32
    scf.if %7 {
      %c0_i32_5 = arith.constant 0 : i32
      %11 = arith.cmpi eq, %arg2, %c0_i32_5 : i32
      %12 = arith.extui %11 : i1 to i32
      %c0_i32_6 = arith.constant 0 : i32
      %13 = arith.cmpi ne, %12, %c0_i32_6 : i32
      scf.if %13 {
        %c0_22 = arith.constant 0 : index
        %c0_23 = arith.constant 0 : index
        %36 = vector.load %arg5[%c0_22, %c0_23] : memref<8x4xf32, #tpu.memory_space<vmem>>, vector<8x4xf32>
        %c0_24 = arith.constant 0 : index
        %c0_25 = arith.constant 0 : index
        %37 = vector.load %arg14[%c0_24, %c0_25] : memref<16x1xf32, #tpu.memory_space<vmem>>, vector<8x1xf32>
        %c8 = arith.constant 8 : index
        %c0_26 = arith.constant 0 : index
        %38 = vector.load %arg14[%c8, %c0_26] : memref<16x1xf32, #tpu.memory_space<vmem>>, vector<8x1xf32>
        %39 = vector.broadcast %37 : vector<8x1xf32> to vector<8x4xf32>
        %40 = arith.mulf %36, %39 : vector<8x4xf32>
        %cst_27 = arith.constant dense<0.000000e+00> : vector<4xf32>
        %41 = vector.multi_reduction <add>, %40, %cst_27 [0] : vector<8x4xf32> to vector<4xf32>
        %42 = vector.shape_cast %41 : vector<4xf32> to vector<1x4xf32>
        %cst_28 = arith.constant 9.765625E-4 : f32
        %43 = vector.broadcast %cst_28 : f32 to vector<1x4xf32>
        %44 = arith.mulf %42, %43 : vector<1x4xf32>
        %45 = vector.broadcast %38 : vector<8x1xf32> to vector<8x4xf32>
        %46 = arith.mulf %36, %45 : vector<8x4xf32>
        %cst_29 = arith.constant dense<0.000000e+00> : vector<4xf32>
        %47 = vector.multi_reduction <add>, %46, %cst_29 [0] : vector<8x4xf32> to vector<4xf32>
        %48 = vector.shape_cast %47 : vector<4xf32> to vector<1x4xf32>
        %cst_30 = arith.constant 9.765625E-4 : f32
        %49 = vector.broadcast %cst_30 : f32 to vector<1x4xf32>
        %50 = arith.mulf %48, %49 : vector<1x4xf32>
        %51 = arith.mulf %44, %44 : vector<1x4xf32>
        %52 = arith.subf %50, %51 : vector<1x4xf32>
        %cst_31 = arith.constant 0.000000e+00 : f32
        %53 = vector.broadcast %cst_31 : f32 to vector<1x4xf32>
        %54 = arith.maximumf %52, %53 : vector<1x4xf32>
        %55 = vector.broadcast %44 : vector<1x4xf32> to vector<8x4xf32>
        %56 = arith.mulf %36, %55 : vector<8x4xf32>
        %cst_32 = arith.constant dense<0.000000e+00> : vector<8xf32>
        %57 = vector.multi_reduction <add>, %56, %cst_32 [1] : vector<8x4xf32> to vector<8xf32>
        %58 = vector.shape_cast %57 : vector<8xf32> to vector<8x1xf32>
        %59 = vector.broadcast %54 : vector<1x4xf32> to vector<8x4xf32>
        %60 = arith.mulf %36, %59 : vector<8x4xf32>
        %cst_33 = arith.constant dense<0.000000e+00> : vector<8xf32>
        %61 = vector.multi_reduction <add>, %60, %cst_33 [1] : vector<8x4xf32> to vector<8xf32>
        %62 = vector.shape_cast %61 : vector<8xf32> to vector<8x1xf32>
        %cst_34 = arith.constant 9.99999974E-6 : f32
        %63 = vector.broadcast %cst_34 : f32 to vector<8x1xf32>
        %64 = arith.addf %62, %63 : vector<8x1xf32>
        %65 = math.rsqrt %64 : vector<8x1xf32>
        %c0_35 = arith.constant 0 : index
        %c0_36 = arith.constant 0 : index
        %66 = vector.load %arg9[%c0_35, %c0_36] : memref<8x1xf32, #tpu.memory_space<vmem>>, vector<8x1xf32>
        %67 = arith.mulf %65, %66 : vector<8x1xf32>
        %c0_37 = arith.constant 0 : index
        %c0_38 = arith.constant 0 : index
        %68 = vector.load %arg15[%c0_37, %c0_38] : memref<8x1xf32, #tpu.memory_space<vmem>>, vector<8x1xf32>
        tpu.vector_store %arg15[%c0_37, %c0_38], %67 {strides = array<i32>} : memref<8x1xf32, #tpu.memory_space<vmem>>, vector<8x1xf32>,
        %c0_39 = arith.constant 0 : index
        %c0_40 = arith.constant 0 : index
        %69 = vector.load %arg10[%c0_39, %c0_40] : memref<8x1xf32, #tpu.memory_space<vmem>>, vector<8x1xf32>
        %70 = arith.mulf %58, %67 : vector<8x1xf32>
        %71 = arith.subf %69, %70 : vector<8x1xf32>
        %c0_41 = arith.constant 0 : index
        %c0_42 = arith.constant 0 : index
        %72 = vector.load %arg16[%c0_41, %c0_42] : memref<8x1xf32, #tpu.memory_space<vmem>>, vector<8x1xf32>
        tpu.vector_store %arg16[%c0_41, %c0_42], %71 {strides = array<i32>} : memref<8x1xf32, #tpu.memory_space<vmem>>, vector<8x1xf32>,
      } else {
      }
      %c0_7 = arith.constant 0 : index
      %c0_8 = arith.constant 0 : index
      %14 = vector.load %arg6[%c0_7, %c0_8] : memref<8x4xbf16, #tpu.memory_space<vmem>>, vector<8x4xbf16>
      %cst = arith.constant dense<0.000000e+00> : vector<8x128xf32>
      %15 = tpu.matmul %14, %1, %cst {dimension_numbers = #tpu.dot_dimension_numbers<[1], [0], [0], [1], [0, 0, 1, 1], [], []>} : vector<8x4xbf16>, vector<4x128xbf16>, vector<8x128xf32> -> vector<8x128xf32>
      %c0_9 = arith.constant 0 : index
      %c0_10 = arith.constant 0 : index
      %16 = vector.load %arg8[%c0_9, %c0_10] : memref<16x1xf32, #tpu.memory_space<vmem>>, vector<8x1xf32>
      %17 = vector.broadcast %16 : vector<8x1xf32> to vector<8x128xf32>
      %18 = arith.addf %15, %17 : vector<8x128xf32>
      %c0_11 = arith.constant 0 : index
      %c0_12 = arith.constant 0 : index
      %19 = vector.load %arg15[%c0_11, %c0_12] : memref<8x1xf32, #tpu.memory_space<vmem>>, vector<8x1xf32>
      %20 = vector.broadcast %19 : vector<8x1xf32> to vector<8x128xf32>
      %21 = arith.mulf %18, %20 : vector<8x128xf32>
      %c0_13 = arith.constant 0 : index
      %c0_14 = arith.constant 0 : index
      %22 = vector.load %arg16[%c0_13, %c0_14] : memref<8x1xf32, #tpu.memory_space<vmem>>, vector<8x1xf32>
      %23 = vector.broadcast %22 : vector<8x1xf32> to vector<8x128xf32>
      %24 = arith.addf %21, %23 : vector<8x128xf32>
      %cst_15 = arith.constant 0.000000e+00 : f32
      %25 = vector.broadcast %cst_15 : f32 to vector<8x128xf32>
      %26 = arith.maximumf %24, %25 : vector<8x128xf32>
      %c128_i32 = arith.constant 128 : i32
      %27 = arith.muli %arg2, %c128_i32 : i32
      %28 = tpu.assume_multiple %27, 128 : i32
      %c0_16 = arith.constant 0 : index
      %29 = arith.index_cast %28 : i32 to index
      %30 = vector.load %arg4[%c0_16, %29] : memref<73x512xbf16, #tpu.memory_space<vmem>>, vector<73x128xbf16>
      %c0_17 = arith.constant 0 : index
      %c0_18 = arith.constant 0 : index
      %31 = vector.load %arg17[%c0_17, %c0_18] : memref<8x73xf32, #tpu.memory_space<vmem>>, vector<8x73xf32>
      %32 = arith.truncf %26 : vector<8x128xf32> to vector<8x128xbf16>
      %cst_19 = arith.constant dense<0.000000e+00> : vector<8x73xf32>
      %33 = tpu.matmul %32, %30, %cst_19 {dimension_numbers = #tpu.dot_dimension_numbers<[1], [1], [0], [0], [0, 0, 1, 0], [], []>} : vector<8x128xbf16>, vector<73x128xbf16>, vector<8x73xf32> -> vector<8x73xf32>
      %34 = arith.addf %31, %33 : vector<8x73xf32>
      %c0_20 = arith.constant 0 : index
      %c0_21 = arith.constant 0 : index
      %35 = vector.load %arg17[%c0_20, %c0_21] : memref<8x73xf32, #tpu.memory_space<vmem>>, vector<8x73xf32>
      tpu.vector_store %arg17[%c0_20, %c0_21], %34 {strides = array<i32>} : memref<8x73xf32, #tpu.memory_space<vmem>>, vector<8x73xf32>,
    } else {
    }
    %c2_i32 = arith.constant 2 : i32
    %8 = arith.cmpi eq, %arg1, %c2_i32 : i32
    %9 = arith.extui %8 : i1 to i32
    %c0_i32_4 = arith.constant 0 : i32
    %10 = arith.cmpi ne, %9, %c0_i32_4 : i32
    scf.if %10 {
      %c0_i32_5 = arith.constant 0 : i32
      %11 = arith.cmpi eq, %arg2, %c0_i32_5 : i32
      %12 = arith.extui %11 : i1 to i32
      %c0_i32_6 = arith.constant 0 : i32
      %13 = arith.cmpi ne, %12, %c0_i32_6 : i32
      scf.if %13 {
        %c0_31 = arith.constant 0 : index
        %c0_32 = arith.constant 0 : index
        %54 = vector.load %arg17[%c0_31, %c0_32] : memref<8x73xf32, #tpu.memory_space<vmem>>, vector<8x73xf32>
        %cst_33 = arith.constant 0.353553385 : f32
        %55 = vector.broadcast %cst_33 : f32 to vector<8x73xf32>
        %56 = arith.mulf %54, %55 : vector<8x73xf32>
        %c0_34 = arith.constant 0 : index
        %c0_35 = arith.constant 0 : index
        %57 = vector.load %arg17[%c0_34, %c0_35] : memref<8x73xf32, #tpu.memory_space<vmem>>, vector<8x73xf32>
        tpu.vector_store %arg17[%c0_34, %c0_35], %56 {strides = array<i32>} : memref<8x73xf32, #tpu.memory_space<vmem>>, vector<8x73xf32>,
      } else {
      }
      %c0_7 = arith.constant 0 : index
      %c0_8 = arith.constant 0 : index
      %14 = vector.load %arg6[%c0_7, %c0_8] : memref<8x4xbf16, #tpu.memory_space<vmem>>, vector<8x4xbf16>
      %cst = arith.constant dense<0.000000e+00> : vector<8x128xf32>
      %15 = tpu.matmul %14, %1, %cst {dimension_numbers = #tpu.dot_dimension_numbers<[1], [0], [0], [1], [0, 0, 1, 1], [], []>} : vector<8x4xbf16>, vector<4x128xbf16>, vector<8x128xf32> -> vector<8x128xf32>
      %c0_9 = arith.constant 0 : index
      %c0_10 = arith.constant 0 : index
      %16 = vector.load %arg8[%c0_9, %c0_10] : memref<16x1xf32, #tpu.memory_space<vmem>>, vector<8x1xf32>
      %17 = vector.broadcast %16 : vector<8x1xf32> to vector<8x128xf32>
      %18 = arith.addf %15, %17 : vector<8x128xf32>
      %c0_11 = arith.constant 0 : index
      %c0_12 = arith.constant 0 : index
      %19 = vector.load %arg15[%c0_11, %c0_12] : memref<8x1xf32, #tpu.memory_space<vmem>>, vector<8x1xf32>
      %20 = vector.broadcast %19 : vector<8x1xf32> to vector<8x128xf32>
      %21 = arith.mulf %18, %20 : vector<8x128xf32>
      %c0_13 = arith.constant 0 : index
      %c0_14 = arith.constant 0 : index
      %22 = vector.load %arg16[%c0_13, %c0_14] : memref<8x1xf32, #tpu.memory_space<vmem>>, vector<8x1xf32>
      %23 = vector.broadcast %22 : vector<8x1xf32> to vector<8x128xf32>
      %24 = arith.addf %21, %23 : vector<8x128xf32>
      %cst_15 = arith.constant 0.000000e+00 : f32
      %25 = vector.broadcast %cst_15 : f32 to vector<8x128xf32>
      %26 = arith.maximumf %24, %25 : vector<8x128xf32>
      %27 = arith.truncf %26 : vector<8x128xf32> to vector<8x128xbf16>
      %c0_16 = arith.constant 0 : index
      %c0_17 = arith.constant 0 : index
      %28 = vector.load %arg17[%c0_16, %c0_17] : memref<8x73xf32, #tpu.memory_space<vmem>>, vector<8x73xf32>
      %29 = arith.truncf %28 : vector<8x73xf32> to vector<8x73xbf16>
      %cst_18 = arith.constant dense<0.000000e+00> : vector<73x128xf32>
      %30 = tpu.matmul %29, %27, %cst_18 {dimension_numbers = #tpu.dot_dimension_numbers<[0], [0], [1], [1], [0, 1, 1, 1], [], []>} : vector<8x73xbf16>, vector<8x128xbf16>, vector<73x128xf32> -> vector<73x128xf32>
      %cst_19 = arith.constant dense<0xFF800000> : vector<128xf32>
      %31 = vector.multi_reduction <maximumf>, %30, %cst_19 [0] : vector<73x128xf32> to vector<128xf32>
      %32 = vector.shape_cast %31 : vector<128xf32> to vector<1x128xf32>
      %33 = vector.broadcast %32 : vector<1x128xf32> to vector<73x128xf32>
      %34 = arith.subf %30, %33 : vector<73x128xf32>
      %35 = math.exp %34 : vector<73x128xf32>
      %36 = arith.truncf %35 : vector<73x128xf32> to vector<73x128xbf16>
      %c0_20 = arith.constant 0 : index
      %c0_21 = arith.constant 0 : index
      %37 = vector.load %arg18[%c0_20, %c0_21] : memref<9x73xf32, #tpu.memory_space<vmem>>, vector<9x73xf32>
      %38 = arith.truncf %37 : vector<9x73xf32> to vector<9x73xbf16>
      %cst_22 = arith.constant dense<0.000000e+00> : vector<9x128xf32>
      %39 = tpu.matmul %38, %36, %cst_22 {dimension_numbers = #tpu.dot_dimension_numbers<[1], [0], [0], [1], [0, 0, 1, 1], [], []>} : vector<9x73xbf16>, vector<73x128xbf16>, vector<9x128xf32> -> vector<9x128xf32>
      %40 = vector.extract_strided_slice %39 {offsets = [0, 0], sizes = [8, 128], strides = [1, 1]} : vector<9x128xf32> to vector<8x128xf32>
      %41 = vector.extract_strided_slice %39 {offsets = [8, 0], sizes = [1, 128], strides = [1, 1]} : vector<9x128xf32> to vector<1x128xf32>
      %42 = tpu.reciprocal %41 {approx = true} : vector<1x128xf32> -> vector<1x128xf32>
      %43 = vector.broadcast %42 : vector<1x128xf32> to vector<8x128xf32>
      %44 = arith.mulf %40, %43 : vector<8x128xf32>
      %c0_23 = arith.constant 0 : index
      %c0_24 = arith.constant 0 : index
      %45 = vector.load %arg11[%c0_23, %c0_24] : memref<4x8xbf16, #tpu.memory_space<vmem>>, vector<4x8xbf16>
      %46 = arith.truncf %44 : vector<8x128xf32> to vector<8x128xbf16>
      %cst_25 = arith.constant dense<0.000000e+00> : vector<4x128xf32>
      %47 = tpu.matmul %45, %46, %cst_25 {dimension_numbers = #tpu.dot_dimension_numbers<[1], [0], [0], [1], [0, 0, 1, 1], [], []>} : vector<4x8xbf16>, vector<8x128xbf16>, vector<4x128xf32> -> vector<4x128xf32>
      %c0_26 = arith.constant 0 : index
      %c0_27 = arith.constant 0 : index
      %48 = vector.load %arg12[%c0_26, %c0_27] : memref<4x1xf32, #tpu.memory_space<vmem>>, vector<4x1xf32>
      %49 = vector.broadcast %48 : vector<4x1xf32> to vector<4x128xf32>
      %50 = arith.addf %47, %49 : vector<4x128xf32>
      %c0_28 = arith.constant 0 : index
      %c0_29 = arith.constant 0 : index
      %c0_30 = arith.constant 0 : index
      %51 = vector.load %arg13[%c0_28, %c0_29, %c0_30] : memref<1x4x128xf32, #tpu.memory_space<vmem>>, vector<1x4x128xf32>
      %52 = vector.shape_cast %51 : vector<1x4x128xf32> to vector<4x128xf32>
      %53 = vector.shape_cast %50 : vector<4x128xf32> to vector<1x4x128xf32>
      tpu.vector_store %arg13[%c0_28, %c0_29, %c0_30], %53 {strides = array<i32>} : memref<1x4x128xf32, #tpu.memory_space<vmem>>, vector<1x4x128xf32>,
    } else {
    }
    return
  }
  func.func @transform_0(%arg0: i32, %arg1: i32, %arg2: i32) -> (i32, i32, i32) {
    %c0_i32 = arith.constant 0 : i32
    %c0_i32_0 = arith.constant 0 : i32
    return %arg0, %c0_i32, %arg2 : i32, i32, i32
  }
  func.func @transform_1(%arg0: i32, %arg1: i32, %arg2: i32) -> (i32, i32) {
    %c0_i32 = arith.constant 0 : i32
    %c0_i32_0 = arith.constant 0 : i32
    %c0_i32_1 = arith.constant 0 : i32
    return %c0_i32, %c0_i32_0 : i32, i32
  }
  func.func @transform_2(%arg0: i32, %arg1: i32, %arg2: i32) -> (i32, i32) {
    %c0_i32 = arith.constant 0 : i32
    %c0_i32_0 = arith.constant 0 : i32
    %c0_i32_1 = arith.constant 0 : i32
    return %c0_i32, %c0_i32_0 : i32, i32
  }
  func.func @transform_3(%arg0: i32, %arg1: i32, %arg2: i32) -> (i32, i32) {
    %c0_i32 = arith.constant 0 : i32
    %c0_i32_0 = arith.constant 0 : i32
    %c0_i32_1 = arith.constant 0 : i32
    return %c0_i32, %c0_i32_0 : i32, i32
  }
  func.func @transform_4(%arg0: i32, %arg1: i32, %arg2: i32) -> (i32, i32) {
    %c0_i32 = arith.constant 0 : i32
    %c0_i32_0 = arith.constant 0 : i32
    %c0_i32_1 = arith.constant 0 : i32
    return %c0_i32, %c0_i32_0 : i32, i32
  }
  func.func @transform_5(%arg0: i32, %arg1: i32, %arg2: i32) -> (i32, i32) {
    %c0_i32 = arith.constant 0 : i32
    %c0_i32_0 = arith.constant 0 : i32
    %c0_i32_1 = arith.constant 0 : i32
    return %c0_i32, %c0_i32_0 : i32, i32
  }
  func.func @transform_6(%arg0: i32, %arg1: i32, %arg2: i32) -> (i32, i32) {
    %c0_i32 = arith.constant 0 : i32
    %c0_i32_0 = arith.constant 0 : i32
    %c0_i32_1 = arith.constant 0 : i32
    return %c0_i32, %c0_i32_0 : i32, i32
  }
  func.func @transform_7(%arg0: i32, %arg1: i32, %arg2: i32) -> (i32, i32) {
    %c0_i32 = arith.constant 0 : i32
    %c0_i32_0 = arith.constant 0 : i32
    %c0_i32_1 = arith.constant 0 : i32
    return %c0_i32, %c0_i32_0 : i32, i32
  }
  func.func @transform_8(%arg0: i32, %arg1: i32, %arg2: i32) -> (i32, i32) {
    %c0_i32 = arith.constant 0 : i32
    %c0_i32_0 = arith.constant 0 : i32
    %c0_i32_1 = arith.constant 0 : i32
    return %c0_i32, %c0_i32_0 : i32, i32
  }
  func.func @transform_9(%arg0: i32, %arg1: i32, %arg2: i32) -> (i32, i32) {
    %c0_i32 = arith.constant 0 : i32
    %c0_i32_0 = arith.constant 0 : i32
    %c0_i32_1 = arith.constant 0 : i32
    return %c0_i32, %c0_i32_0 : i32, i32
  }
  func.func @transform_10(%arg0: i32, %arg1: i32, %arg2: i32) -> (i32, i32, i32) {
    %c2_i32 = arith.constant 2 : i32
    %0 = arith.cmpi eq, %arg1, %c2_i32 : i32
    %c0_i32 = arith.constant 0 : i32
    %1 = arith.select %0, %arg2, %c0_i32 : i32
    %c0_i32_0 = arith.constant 0 : i32
    %c0_i32_1 = arith.constant 0 : i32
    return %arg0, %c0_i32_0, %1 : i32, i32, i32
  }
}

</mosaic_0001>

<llo_original>
// kernel: tpu_custom_call.1
$region0: #{tpu_custom_call.1}
  #allocation0 [shape = 'u32[]', space=smem, size = 0x4, offset = 0x4, fixed_abs, tag = 'smem constant byte address 0x4 - core index']
  #allocation1 [shape = 'u32[72,128]{1,0:T(1,128)}', space=vmem, size = 0x9000, scoped, tag = 'internal scratch']
  #allocation2 [shape = 'f32[16,1]{1,0:T(8,128)}', space=vmem, size = 0x2000, scoped, tag = 'scratch operand']
  #allocation3 [shape = 'f32[8,1]{1,0:T(8,128)}', space=vmem, size = 0x1000, scoped, tag = 'scratch operand']
  #allocation4 [shape = 'f32[8,1]{1,0:T(8,128)}', space=vmem, size = 0x1000, scoped, tag = 'scratch operand']
  #allocation5 [shape = 'f32[8,73]{1,0:T(8,128)}', space=vmem, size = 0x1000, scoped, tag = 'scratch operand']
  #allocation6 [shape = 'f32[9,73]{1,0:T(8,128)}', space=vmem, size = 0x2000, scoped, tag = 'scratch operand']
  %s0 = inlined_call_operand.vmem [shape: bf16[2,4,512], index: 0, kind: input, shape index: {}]
  %s1 = inlined_call_operand.hbm [shape: bf16[73,512], index: 1, kind: input, shape index: {}]
  %s2 = inlined_call_operand.vmem [shape: f32[8,4], index: 2, kind: input, shape index: {}]
  %s3 = inlined_call_operand.vmem [shape: bf16[8,4], index: 3, kind: input, shape index: {}]
  %s4 = inlined_call_operand.vmem [shape: bf16[16,4], index: 4, kind: input, shape index: {}]
  %s5 = inlined_call_operand.vmem [shape: f32[16,1], index: 5, kind: input, shape index: {}]
  %s6 = inlined_call_operand.vmem [shape: f32[8,1], index: 6, kind: input, shape index: {}]
  %s7 = inlined_call_operand.vmem [shape: f32[8,1], index: 7, kind: input, shape index: {}]
  %s8 = inlined_call_operand.vmem [shape: bf16[4,8], index: 8, kind: input, shape index: {}]
  %s9 = inlined_call_operand.vmem [shape: f32[4,1], index: 9, kind: input, shape index: {}]
  %s10 = inlined_call_operand.hbm [shape: f32[2,4,512], index: 10, kind: output, shape index: {}]
  %s11 = sld [smem:[#allocation0]]
  $region101: #{tpu_custom_call.1} parent=0
    _
  %s13 = ssub.s32 1, %s11
  %s14 = scalar_select 0, %s13, %s11
  $region1: #{tpu_custom_call.1} parent=0
    #allocation7 [shape = 'u8[81920]{0}', space=vmem, size = 0x14000, scoped, tag = 'input window, operand 1, single buffered']
    #allocation8 [shape = 's32[2]{0}', space=sflag, size = 0x8, scoped, tag = 'scoped memory for tpu_custom_call.1']
    #allocation9 [shape = 's32[2]{0}', space=sflag, size = 0x8, scoped, tag = 'scoped memory for tpu_custom_call.1']
    #allocation10 [shape = 'u8[4096]{0}', space=vmem, size = 0x1000, scoped, tag = 'output window, operand 0']
    %15 = vsyncpa [#allocation8], 0
    %16 = vsyncpa [#allocation9], 0
    %s17 = scalar_lea.sflag [#allocation9], 1
    %18 = vsyncpa %s17, 0
    loop: start=0, step=1, limit=26
    $region2: #{tpu_custom_call.1} parent=1 // loop_pre_header
      _
    $region3: #{tpu_custom_call.1} parent=1 // loop_header
      %s20 = sphi 0, %s24
      %p21 = scmp.ge.s32.totalorder %s20, 26
      %s27 = sphi 0, %s46
      %s28 = sphi 0, %s42
      %s29 = sphi 0, %s38
      %s30 = sphi 0, %s27
      %s31 = sphi 0, %s28
      %s32 = sphi 0, %s29
      %s33 = sphi 0, %s30
      %s34 = sphi 0, %s31
      %s35 = sphi 0, %s32
      %s51 = sphi 0, %s53
      %s54 = sphi 0, %s51
      %s55 = sphi 0, %s54
      %s71 = sphi 0, %s55
      %s75 = sphi 0, %s75
      %s77 = sphi 0, %s75
      %s78 = sphi 0, %s77
      %s92 = sphi 0, %s78
      %s96 = sphi 0, %s96
      %s98 = sphi 0, %s96
      %s99 = sphi 0, %s98
      %s113 = sphi 0, %s99
      %s117 = sphi 0, %s117
      %s119 = sphi 0, %s117
      %s120 = sphi 0, %s119
      %s134 = sphi 0, %s120
      %s138 = sphi 0, %s138
      %s140 = sphi 0, %s138
      %s141 = sphi 0, %s140
      %s155 = sphi 0, %s141
      %s159 = sphi 0, %s159
      %s161 = sphi 0, %s159
      %s162 = sphi 0, %s161
      %s176 = sphi 0, %s162
      %s180 = sphi 0, %s180
      %s182 = sphi 0, %s180
      %s183 = sphi 0, %s182
      %s197 = sphi 0, %s183
      %s201 = sphi 0, %s201
      %s203 = sphi 0, %s201
      %s204 = sphi 0, %s203
      %s218 = sphi 0, %s204
      %s222 = sphi 0, %s222
      %s224 = sphi 0, %s222
      %s225 = sphi 0, %s224
      %s239 = sphi 0, %s225
      %s243 = sphi 0, %s243
      %s245 = sphi 0, %s243
      %s246 = sphi 0, %s245
      %s260 = sphi 0, %s246
      %s272 = sphi 0, %s274
      %s275 = sphi 0, %s272
      %s276 = sphi 0, %s275
      %s292 = sphi 0, %s276
    $region4: #{tpu_custom_call.1} parent=1 // loop_header_branch
      %23 = sbr.rel (%p21) target = $region8
    $region5: #{tpu_custom_call.1} parent=1 // loop_body
      %s25 = ssub.s32 %s20, 1
      %s26 = ssub.s32 %s20, 2
      %s36 = sadd.s32 1, %s29
      %p37 = scmp.ge.s32.totalorder %s36, 4
      %s38 = scalar_select %p37, 0, %s36
      %s39 = sadd.s32 1, %s28
      %s40 = scalar_select %p37, %s39, %s28
      %p41 = scmp.ge.s32.totalorder %s40, 3
      %s42 = scalar_select %p41, 0, %s40
      %s43 = sadd.s32 1, %s27
      %s44 = scalar_select %p41, %s43, %s27
      %p45 = scmp.ge.s32.totalorder %s44, 2
      %s46 = scalar_select %p45, 0, %s44
      %s47 = ssub.s32 %s27, %s46
      %s48 = ssub.s32 %s29, %s38
      %s49 = sor.u32 %s47, %s48
      %p50 = scmp.eq.s32.totalorder %s49, 0
      %s52 = sadd.s32 %s51, 1
      %s53 = scalar_select %p50, %s51, %s52
      %p56 = pneg %p50
      %p57 = scmp.eq.s32.totalorder %s20, 23
      %p58 = por %p56, %p57
      %p59 = scmp.ne.s32.totalorder %s51, %s54
      %p60 = scmp.eq.s32.totalorder %s20, 0
      %p61 = por %p59, %p60
      %p62 = scmp.ne.s32.totalorder %s51, %s54
      %p63 = scmp.eq.s32.totalorder %s25, 23
      %p64 = por %p62, %p63
      %p65 = scmp.ne.s32.totalorder %s54, %s55
      %p66 = scmp.eq.s32.totalorder %s25, 0
      %p67 = por %p65, %p66
      %p68 = scmp.ne.s32.totalorder %s54, %s55
      %p69 = scmp.eq.s32.totalorder %s26, 23
      %p70 = por %p68, %p69
      %p72 = scmp.ne.s32.totalorder %s55, %s71
      %p73 = scmp.eq.s32.totalorder %s26, 0
      %p74 = por %p72, %p73
      %s76 = sadd.s32 %s75, 1
      %p79 = scmp.eq.s32.totalorder %s20, 23
      %p80 = scmp.ne.s32.totalorder %s75, %s77
      %p81 = scmp.eq.s32.totalorder %s20, 0
      %p82 = por %p80, %p81
      %p83 = scmp.ne.s32.totalorder %s75, %s77
      %p84 = scmp.eq.s32.totalorder %s25, 23
      %p85 = por %p83, %p84
      %p86 = scmp.ne.s32.totalorder %s77, %s78
      %p87 = scmp.eq.s32.totalorder %s25, 0
      %p88 = por %p86, %p87
      %p89 = scmp.ne.s32.totalorder %s77, %s78
      %p90 = scmp.eq.s32.totalorder %s26, 23
      %p91 = por %p89, %p90
      %p93 = scmp.ne.s32.totalorder %s78, %s92
      %p94 = scmp.eq.s32.totalorder %s26, 0
      %p95 = por %p93, %p94
      %s97 = sadd.s32 %s96, 1
      %p100 = scmp.eq.s32.totalorder %s20, 23
      %p101 = scmp.ne.s32.totalorder %s96, %s98
      %p102 = scmp.eq.s32.totalorder %s20, 0
      %p103 = por %p101, %p102
      %p104 = scmp.ne.s32.totalorder %s96, %s98
      %p105 = scmp.eq.s32.totalorder %s25, 23
      %p106 = por %p104, %p105
      %p107 = scmp.ne.s32.totalorder %s98, %s99
      %p108 = scmp.eq.s32.totalorder %s25, 0
      %p109 = por %p107, %p108
      %p110 = scmp.ne.s32.totalorder %s98, %s99
      %p111 = scmp.eq.s32.totalorder %s26, 23
      %p112 = por %p110, %p111
      %p114 = scmp.ne.s32.totalorder %s99, %s113
      %p115 = scmp.eq.s32.totalorder %s26, 0
      %p116 = por %p114, %p115
      %s118 = sadd.s32 %s117, 1
      %p121 = scmp.eq.s32.totalorder %s20, 23
      %p122 = scmp.ne.s32.totalorder %s117, %s119
      %p123 = scmp.eq.s32.totalorder %s20, 0
      %p124 = por %p122, %p123
      %p125 = scmp.ne.s32.totalorder %s117, %s119
      %p126 = scmp.eq.s32.totalorder %s25, 23
      %p127 = por %p125, %p126
      %p128 = scmp.ne.s32.totalorder %s119, %s120
      %p129 = scmp.eq.s32.totalorder %s25, 0
      %p130 = por %p128, %p129
      %p131 = scmp.ne.s32.totalorder %s119, %s120
      %p132 = scmp.eq.s32.totalorder %s26, 23
      %p133 = por %p131, %p132
      %p135 = scmp.ne.s32.totalorder %s120, %s134
      %p136 = scmp.eq.s32.totalorder %s26, 0
      %p137 = por %p135, %p136
      %s139 = sadd.s32 %s138, 1
      %p142 = scmp.eq.s32.totalorder %s20, 23
      %p143 = scmp.ne.s32.totalorder %s138, %s140
      %p144 = scmp.eq.s32.totalorder %s20, 0
      %p145 = por %p143, %p144
      %p146 = scmp.ne.s32.totalorder %s138, %s140
      %p147 = scmp.eq.s32.totalorder %s25, 23
      %p148 = por %p146, %p147
      %p149 = scmp.ne.s32.totalorder %s140, %s141
      %p150 = scmp.eq.s32.totalorder %s25, 0
      %p151 = por %p149, %p150
      %p152 = scmp.ne.s32.totalorder %s140, %s141
      %p153 = scmp.eq.s32.totalorder %s26, 23
      %p154 = por %p152, %p153
      %p156 = scmp.ne.s32.totalorder %s141, %s155
      %p157 = scmp.eq.s32.totalorder %s26, 0
      %p158 = por %p156, %p157
      %s160 = sadd.s32 %s159, 1
      %p163 = scmp.eq.s32.totalorder %s20, 23
      %p164 = scmp.ne.s32.totalorder %s159, %s161
      %p165 = scmp.eq.s32.totalorder %s20, 0
      %p166 = por %p164, %p165
      %p167 = scmp.ne.s32.totalorder %s159, %s161
      %p168 = scmp.eq.s32.totalorder %s25, 23
      %p169 = por %p167, %p168
      %p170 = scmp.ne.s32.totalorder %s161, %s162
      %p171 = scmp.eq.s32.totalorder %s25, 0
      %p172 = por %p170, %p171
      %p173 = scmp.ne.s32.totalorder %s161, %s162
      %p174 = scmp.eq.s32.totalorder %s26, 23
      %p175 = por %p173, %p174
      %p177 = scmp.ne.s32.totalorder %s162, %s176
      %p178 = scmp.eq.s32.totalorder %s26, 0
      %p179 = por %p177, %p178
      %s181 = sadd.s32 %s180, 1
      %p184 = scmp.eq.s32.totalorder %s20, 23
      %p185 = scmp.ne.s32.totalorder %s180, %s182
      %p186 = scmp.eq.s32.totalorder %s20, 0
      %p187 = por %p185, %p186
      %p188 = scmp.ne.s32.totalorder %s180, %s182
      %p189 = scmp.eq.s32.totalorder %s25, 23
      %p190 = por %p188, %p189
      %p191 = scmp.ne.s32.totalorder %s182, %s183
      %p192 = scmp.eq.s32.totalorder %s25, 0
      %p193 = por %p191, %p192
      %p194 = scmp.ne.s32.totalorder %s182, %s183
      %p195 = scmp.eq.s32.totalorder %s26, 23
      %p196 = por %p194, %p195
      %p198 = scmp.ne.s32.totalorder %s183, %s197
      %p199 = scmp.eq.s32.totalorder %s26, 0
      %p200 = por %p198, %p199
      %s202 = sadd.s32 %s201, 1
      %p205 = scmp.eq.s32.totalorder %s20, 23
      %p206 = scmp.ne.s32.totalorder %s201, %s203
      %p207 = scmp.eq.s32.totalorder %s20, 0
      %p208 = por %p206, %p207
      %p209 = scmp.ne.s32.totalorder %s201, %s203
      %p210 = scmp.eq.s32.totalorder %s25, 23
      %p211 = por %p209, %p210
      %p212 = scmp.ne.s32.totalorder %s203, %s204
      %p213 = scmp.eq.s32.totalorder %s25, 0
      %p214 = por %p212, %p213
      %p215 = scmp.ne.s32.totalorder %s203, %s204
      %p216 = scmp.eq.s32.totalorder %s26, 23
      %p217 = por %p215, %p216
      %p219 = scmp.ne.s32.totalorder %s204, %s218
      %p220 = scmp.eq.s32.totalorder %s26, 0
      %p221 = por %p219, %p220
      %s223 = sadd.s32 %s222, 1
      %p226 = scmp.eq.s32.totalorder %s20, 23
      %p227 = scmp.ne.s32.totalorder %s222, %s224
      %p228 = scmp.eq.s32.totalorder %s20, 0
      %p229 = por %p227, %p228
      %p230 = scmp.ne.s32.totalorder %s222, %s224
      %p231 = scmp.eq.s32.totalorder %s25, 23
      %p232 = por %p230, %p231
      %p233 = scmp.ne.s32.totalorder %s224, %s225
      %p234 = scmp.eq.s32.totalorder %s25, 0
      %p235 = por %p233, %p234
      %p236 = scmp.ne.s32.totalorder %s224, %s225
      %p237 = scmp.eq.s32.totalorder %s26, 23
      %p238 = por %p236, %p237
      %p240 = scmp.ne.s32.totalorder %s225, %s239
      %p241 = scmp.eq.s32.totalorder %s26, 0
      %p242 = por %p240, %p241
      %s244 = sadd.s32 %s243, 1
      %p247 = scmp.eq.s32.totalorder %s20, 23
      %p248 = scmp.ne.s32.totalorder %s243, %s245
      %p249 = scmp.eq.s32.totalorder %s20, 0
      %p250 = por %p248, %p249
      %p251 = scmp.ne.s32.totalorder %s243, %s245
      %p252 = scmp.eq.s32.totalorder %s25, 23
      %p253 = por %p251, %p252
      %p254 = scmp.ne.s32.totalorder %s245, %s246
      %p255 = scmp.eq.s32.totalorder %s25, 0
      %p256 = por %p254, %p255
      %p257 = scmp.ne.s32.totalorder %s245, %s246
      %p258 = scmp.eq.s32.totalorder %s26, 23
      %p259 = por %p257, %p258
      %p261 = scmp.ne.s32.totalorder %s246, %s260
      %p262 = scmp.eq.s32.totalorder %s26, 0
      %p263 = por %p261, %p262
      %p264 = scmp.eq.s32.totalorder %s28, 2
      %s265 = scalar_select %p264, %s29, 0
      %p266 = scmp.eq.s32.totalorder %s42, 2
      %s267 = scalar_select %p266, %s38, 0
      %s268 = ssub.s32 %s27, %s46
      %s269 = ssub.s32 %s265, %s267
      %s270 = sor.u32 %s268, %s269
      %p271 = scmp.eq.s32.totalorder %s270, 0
      %s273 = sadd.s32 %s272, 1
      %s274 = scalar_select %p271, %s272, %s273
      %p277 = pneg %p271
      %p278 = scmp.eq.s32.totalorder %s20, 23
      %p279 = por %p277, %p278
      %p280 = scmp.ne.s32.totalorder %s272, %s275
      %p281 = scmp.eq.s32.totalorder %s20, 0
      %p282 = por %p280, %p281
      %p283 = scmp.ne.s32.totalorder %s272, %s275
      %p284 = scmp.eq.s32.totalorder %s25, 23
      %p285 = por %p283, %p284
      %p286 = scmp.ne.s32.totalorder %s275, %s276
      %p287 = scmp.eq.s32.totalorder %s25, 0
      %p288 = por %p286, %p287
      %p289 = scmp.ne.s32.totalorder %s275, %s276
      %p290 = scmp.eq.s32.totalorder %s26, 23
      %p291 = por %p289, %p290
      %p293 = scmp.ne.s32.totalorder %s276, %s292
      %p294 = scmp.eq.s32.totalorder %s26, 0
      %p295 = por %p293, %p294
      %p296 = scmp.le.s32.totalorder 1, %s20
      %p297 = scmp.lt.s32.totalorder %s20, 25
      %p298 = pnand %p296, %p297
      %p299 = pneg %p298
      // Predicated region
      $region9: #{tpu_custom_call.1} parent=5 // pred_check
        _
      $region10: #{tpu_custom_call.1} parent=5 // pred_check_branch
        %301 = sbr.rel (%p298) target = $region12
      $region11: #{tpu_custom_call.1} parent=5 // pred_region
        %s302 = ssub.s32 %s20, 1
        // Predicated region
        $region13: #{tpu_custom_call.1} parent=11 // pred_check
          %p303 = pneg %p88
        $region14: #{tpu_custom_call.1} parent=11 // pred_check_branch
          %305 = sbr.rel (%p303) target = $region16
        $region15: #{tpu_custom_call.1} parent=11 // pred_region
          %307 = vsyncadd [#allocation8], 0
          %s308 = sshll.u32 %s1, 4
          %s309 = int_to_ptr.hbm [resolvable:$true] %s308
          %s310 = sshll.u32 [#allocation7], 4
          %s311 = int_to_ptr.vmem [resolvable:$true] %s310
          %316 = dma.hbm_to_vmem [thread:$0]  %s309, 2560, %s311, [#allocation8], 256, 256, 16
        $region16: #{tpu_custom_call.1} parent=11 // pred_fallthru
          _
        // Predicated region
        $region17: #{tpu_custom_call.1} parent=11 // pred_check
          %p317 = pneg %p109
        $region18: #{tpu_custom_call.1} parent=11 // pred_check_branch
          %319 = sbr.rel (%p317) target = $region20
        $region19: #{tpu_custom_call.1} parent=11 // pred_region
          _
        $region20: #{tpu_custom_call.1} parent=11 // pred_fallthru
          _
        // Predicated region
        $region21: #{tpu_custom_call.1} parent=11 // pred_check
          %p320 = pneg %p130
        $region22: #{tpu_custom_call.1} parent=11 // pred_check_branch
          %322 = sbr.rel (%p320) target = $region24
        $region23: #{tpu_custom_call.1} parent=11 // pred_region
          _
        $region24: #{tpu_custom_call.1} parent=11 // pred_fallthru
          _
        // Predicated region
        $region25: #{tpu_custom_call.1} parent=11 // pred_check
          %p323 = pneg %p151
        $region26: #{tpu_custom_call.1} parent=11 // pred_check_branch
          %325 = sbr.rel (%p323) target = $region28
        $region27: #{tpu_custom_call.1} parent=11 // pred_region
          _
        $region28: #{tpu_custom_call.1} parent=11 // pred_fallthru
          _
        // Predicated region
        $region29: #{tpu_custom_call.1} parent=11 // pred_check
          %p326 = pneg %p172
        $region30: #{tpu_custom_call.1} parent=11 // pred_check_branch
          %328 = sbr.rel (%p326) target = $region32
        $region31: #{tpu_custom_call.1} parent=11 // pred_region
          _
        $region32: #{tpu_custom_call.1} parent=11 // pred_fallthru
          _
        // Predicated region
        $region33: #{tpu_custom_call.1} parent=11 // pred_check
          %p329 = pneg %p193
        $region34: #{tpu_custom_call.1} parent=11 // pred_check_branch
          %331 = sbr.rel (%p329) target = $region36
        $region35: #{tpu_custom_call.1} parent=11 // pred_region
          _
        $region36: #{tpu_custom_call.1} parent=11 // pred_fallthru
          _
        // Predicated region
        $region37: #{tpu_custom_call.1} parent=11 // pred_check
          %p332 = pneg %p214
        $region38: #{tpu_custom_call.1} parent=11 // pred_check_branch
          %334 = sbr.rel (%p332) target = $region40
        $region39: #{tpu_custom_call.1} parent=11 // pred_region
          _
        $region40: #{tpu_custom_call.1} parent=11 // pred_fallthru
          _
        // Predicated region
        $region41: #{tpu_custom_call.1} parent=11 // pred_check
          %p335 = pneg %p235
        $region42: #{tpu_custom_call.1} parent=11 // pred_check_branch
          %337 = sbr.rel (%p335) target = $region44
        $region43: #{tpu_custom_call.1} parent=11 // pred_region
          _
        $region44: #{tpu_custom_call.1} parent=11 // pred_fallthru
          _
        // Predicated region
        $region45: #{tpu_custom_call.1} parent=11 // pred_check
          %p338 = pneg %p256
        $region46: #{tpu_custom_call.1} parent=11 // pred_check_branch
          %340 = sbr.rel (%p338) target = $region48
        $region47: #{tpu_custom_call.1} parent=11 // pred_region
          _
        $region48: #{tpu_custom_call.1} parent=11 // pred_fallthru
          _
      $region12: #{tpu_custom_call.1} parent=5 // pred_fallthru
        _
      %p341 = scmp.lt.s32.totalorder %s20, 24
      // Predicated region
      $region49: #{tpu_custom_call.1} parent=5 // pred_check
        %p342 = pneg %p341
      $region50: #{tpu_custom_call.1} parent=5 // pred_check_branch
        %344 = sbr.rel (%p342) target = $region52
      $region51: #{tpu_custom_call.1} parent=5 // pred_region
        // Predicated region
        $region53: #{tpu_custom_call.1} parent=51 // pred_check
          %p345 = pneg %p61
        $region54: #{tpu_custom_call.1} parent=51 // pred_check_branch
          %347 = sbr.rel (%p345) target = $region56
        $region55: #{tpu_custom_call.1} parent=51 // pred_region
          %p348 = scmp.lt.s32.totalorder %s27, 1
          %s349 = scalar_select %p348, %s27, 1
          %p350 = scmp.lt.s32.totalorder %s29, 3
          %s351 = scalar_select %p350, %s29, 3
          %s352 = smul.addr %s349, 4
          %s353 = sadd.s32 %s351, %s352
          %s354 = smul.addr %s353, 2
          %s355 = scalar_lea.vmem %s0, %s354
        $region56: #{tpu_custom_call.1} parent=51 // pred_fallthru
          _
      $region52: #{tpu_custom_call.1} parent=5 // pred_fallthru
        _
      %p356 = scmp.le.s32.totalorder 1, %s20
      %p357 = scmp.lt.s32.totalorder %s20, 25
      %p358 = pnand %p356, %p357
      %p359 = pneg %p358
      // Predicated region
      $region57: #{tpu_custom_call.1} parent=5 // pred_check
        _
      $region58: #{tpu_custom_call.1} parent=5 // pred_check_branch
        %361 = sbr.rel (%p358) target = $region60
      $region59: #{tpu_custom_call.1} parent=5 // pred_region
        %s362 = ssub.s32 %s20, 1
        // Predicated region
        $region61: #{tpu_custom_call.1} parent=59 // pred_check
          %p363 = pneg %p88
        $region62: #{tpu_custom_call.1} parent=59 // pred_check_branch
          %365 = sbr.rel (%p363) target = $region64
        $region63: #{tpu_custom_call.1} parent=59 // pred_region
          %367 = dma.done [#allocation8], 2560
        $region64: #{tpu_custom_call.1} parent=59 // pred_fallthru
          _
        %p368 = scmp.lt.s32.totalorder %s30, 1
        %s369 = scalar_select %p368, %s30, 1
        %p370 = scmp.lt.s32.totalorder %s32, 3
        %s371 = scalar_select %p370, %s32, 3
        %s372 = smul.addr %s369, 4
        %s373 = sadd.s32 %s371, %s372
        %s374 = smul.addr %s373, 2
        %s375 = scalar_lea.vmem %s0, %s374
        %p376 = pneg %p67
        %p377 = pneg %p64
        %p378 = pneg %p88
        %p379 = pneg %p85
        %p380 = pneg %p109
        %p381 = pneg %p106
        %p382 = pneg %p130
        %p383 = pneg %p127
        %p384 = pneg %p151
        %p385 = pneg %p148
        %p386 = pneg %p172
        %p387 = pneg %p169
        %p388 = pneg %p193
        %p389 = pneg %p190
        %p390 = pneg %p214
        %p391 = pneg %p211
        %p392 = pneg %p235
        %p393 = pneg %p232
        %p394 = pneg %p256
        %p395 = pneg %p253
        %p396 = pneg %p288
        %p397 = pneg %p285
        %s398 = sand.u32 %s275, 1
        %s399 = scalar_lea.sflag [#allocation9], %s398
        %s400 = sand.u32 %s275, 1
        %s401 = smul.addr %s400, 4
        %s402 = scalar_lea.vmem [#allocation10], %s401
        %p403 = scmp.lt.s32.totalorder %s30, 1
        %s404 = scalar_select %p403, %s30, 1
        %p405 = scmp.lt.s32.totalorder %s32, 3
        %s406 = scalar_select %p405, %s32, 3
        %s407 = smul.addr %s404, 4
        %s408 = sadd.s32 %s406, %s407
        %s409 = smul.addr %s408, 2
        %s410 = scalar_lea.vmem %s0, %s409
        %p411 = scmp.eq.s32.totalorder %s31, 2
        %s412 = scalar_select %p411, %s32, 0
        %v414 = vld [vmem:[%s410] sm:$0x3]
        %p415 = scmp.eq.s32.totalorder %s31, 0
        // Predicated region
        $region65: #{tpu_custom_call.1} parent=59 // pred_check
          %p416 = pneg %p415
        $region66: #{tpu_custom_call.1} parent=59 // pred_check_branch
          %418 = sbr.rel (%p416) target = $region68
        $region67: #{tpu_custom_call.1} parent=59 // pred_region
          %p419 = scmp.eq.s32.totalorder %s32, 0
          // Predicated region
          $region69: #{tpu_custom_call.1} parent=67 // pred_check
            %p420 = pneg %p419
          $region70: #{tpu_custom_call.1} parent=67 // pred_check_branch
            %422 = sbr.rel (%p420) target = $region72
          $region71: #{tpu_custom_call.1} parent=67 // pred_region
            %vm423 = vcmask 7168
            %424 = vst.msk [vmem:[#allocation2] sm:$0xff] %vm423, 0.0
            %425 = vst.msk [vmem:[#allocation2 + $0x8] sm:$0xff] %vm423, 0.0
            %vm426 = vcmask 596992
            %427 = vst.msk [vmem:[#allocation5] sm:$0xff] %vm426, 0.0
            %428 = vst.msk [vmem:[#allocation6] sm:$0xff] %vm426, 0.0
            %vm429 = vcmask 589824
            %430 = vst.msk [vmem:[#allocation6 + $0x8] sm:$0x1] %vm429, 0.0
          $region72: #{tpu_custom_call.1} parent=67 // pred_fallthru
            _
          %v431 = vld [vmem:[%s4] sm:$0xf]
          %v432 = vld [vmem:[%s4 + $0x4] sm:$0xf]
          %v433 = vld [vmem:[%s5] sm:$0xff]
          %v434 = vld [vmem:[%s5 + $0x8] sm:$0xff]
          %436 = vset.pattern.permute.xlu0 0
          %437 = vperm.xlu0 %436, %v433
          %v438 = vpop.permute.xlu0 %437
          %441 = vset.pattern.permute.xlu0 0
          %442 = vperm.xlu0 %441, %v434
          %v443 = vpop.permute.xlu0 %442
          %v447 = vunpack.c.l.b16 %v431
          %v448 = vunpack.c.l.b16 %v432
          %v449 = vpack.c.b16 %v448, %v447
          %vm450 = vcmask 31744
          %v452 = vsel %vm450, %v449, 0
          %vm454 = vcmask 1041408
          %v456 = vsel %vm454, %v414, 0
          %458 = vmatpush.bf16.msra.mxu0 0
          %459 = vmatpush.bf16.msra.mxu0 0
          %460 = vmatpush.bf16.msra.mxu0 0
          %461 = vmatpush.bf16.msra.mxu0 0
          %462 = vmatpush.bf16.msra.mxu0 0
          %463 = vmatpush.bf16.msra.mxu0 0
          %464 = vmatpush.bf16.msra.mxu0 0
          %465 = vmatpush.bf16.msra.mxu0 %v456
          %466 = vmatmul.bf16.gmra.mxu0 %v452
          %v467 = vpop.f32.mrf.mxu0
          %v468 = vadd.f32 %v438, %v467
          %v469 = vpop.f32.mrf.mxu0
          %v470 = vadd.f32 %v443, %v469
          %471 = vdwg.mxu0
          %v472 = vmul.f32 %v468, %v468
          %v473 = vld [vmem:[#allocation2] sm:$0xff]
          %v474 = vld [vmem:[#allocation2 + $0x8] sm:$0xff]
          %475 = vmatpush.msra.mxu0 1.0
          %476 = vmatpush.msra.mxu0 1.0
          %477 = vmatpush.msra.mxu0 1.0
          %478 = vmatpush.msra.mxu0 1.0
          %479 = vmatpush.msra.mxu0 1.0
          %480 = vmatpush.msra.mxu0 1.0
          %481 = vmatpush.msra.mxu0 1.0
          %482 = vmatpush.msra.mxu0 1.0
          %483 = vmatpush.msra.mxu0 1.0
          %484 = vmatpush.msra.mxu0 1.0
          %485 = vmatpush.msra.mxu0 1.0
          %486 = vmatpush.msra.mxu0 1.0
          %487 = vmatpush.msra.mxu0 1.0
          %488 = vmatpush.msra.mxu0 1.0
          %489 = vmatpush.msra.mxu0 1.0
          %490 = vmatpush.msra.mxu0 1.0
          %491 = vmatmul.f32.gmra.mxu0 %v468
          %v492 = vpop.f32.mrf.mxu0
          %v493 = vadd.f32 0.0, %v492
          %494 = vmatmul.f32.gmra.mxu0 %v472
          %v495 = vpop.f32.mrf.mxu0
          %v496 = vadd.f32 0.0, %v495
          %497 = vdwg.mxu0
          %v498 = vadd.f32 %v473, %v493
          %v499 = vadd.f32 %v474, %v496
          %vm500 = vcmask 7168
          %501 = vst.msk [vmem:[#allocation2] sm:$0xff] %vm500, %v498
          %502 = vst.msk [vmem:[#allocation2 + $0x8] sm:$0xff] %vm500, %v499
          %s503 = smul.u32 %s32, 128
          %s504 = sshra.s32 %s503, 7
          %s505 = sand.u32 %s503, 127
          %s506 = smul.addr %s504, 4
          %s507 = scalar_lea.vmem [#allocation7], %s506
          %v508 = vld [vmem:[%s507] sm:$0xf]
          %v509 = vld [vmem:[%s507 + $0x10] sm:$0xf]
          %v510 = vld [vmem:[%s507 + $0x20] sm:$0xf]
          %v511 = vld [vmem:[%s507 + $0x30] sm:$0xf]
          %v512 = vld [vmem:[%s507 + $0x40] sm:$0xf]
          %v513 = vld [vmem:[%s507 + $0x50] sm:$0xf]
          %v514 = vld [vmem:[%s507 + $0x60] sm:$0xf]
          %v515 = vld [vmem:[%s507 + $0x70] sm:$0xf]
          %v516 = vld [vmem:[%s507 + $0x80] sm:$0xf]
          %v517 = vld [vmem:[%s507 + $0x90] sm:$0x1]
          %v518 = vpack.c.bf16 1.0, %v470
          %v519 = vld [vmem:[#allocation6] sm:$0xff]
          %v520 = vld [vmem:[#allocation6 + $0x8] sm:$0x1]
          %v531 = vunpack.c.l.b16 %v508
          %v532 = vunpack.c.l.b16 %v509
          %v533 = vunpack.c.l.b16 %v510
          %v534 = vunpack.c.l.b16 %v511
          %v535 = vunpack.c.l.b16 %v512
          %v536 = vunpack.c.l.b16 %v513
          %v537 = vunpack.c.l.b16 %v514
          %v538 = vunpack.c.l.b16 %v515
          %v539 = vunpack.c.l.b16 %v516
          %v540 = vunpack.c.l.b16 %v517
          %v541 = vpack.c.b16 %v532, %v531
          %v542 = vpack.c.b16 %v534, %v533
          %v543 = vpack.c.b16 %v536, %v535
          %v544 = vpack.c.b16 %v538, %v537
          %v545 = vpack.c.b16 %v540, %v539
          %551 = vmatpush.bf16.xpose.msra.mxu0 0
          %552 = vmatpush.bf16.xpose.msra.mxu0 0
          %553 = vmatpush.bf16.xpose.msra.mxu0 0
          %554 = vmatpush.bf16.xpose.msra.mxu0 %v545
          %555 = vmatpush.bf16.xpose.msra.mxu0 %v544
          %556 = vmatpush.bf16.xpose.msra.mxu0 %v543
          %557 = vmatpush.bf16.xpose.msra.mxu0 %v542
          %558 = vmatpush.bf16.xpose.msra.mxu0 %v541
          %559 = vmatmul.bf16.gmra.mxu0 %v518
          %v560 = vpop.f32.mrf.mxu0
          %v561 = vadd.f32 0.0, %v560
          %v562 = vpop.f32.mrf.mxu0
          %v563 = vadd.f32 0.0, %v562
          %564 = vdwg.mxu0
          %v565 = vadd.f32 %v519, %v561
          %v566 = vadd.f32 %v520, %v563
          %vm567 = vcmask 596992
          %568 = vst.msk [vmem:[#allocation6] sm:$0xff] %vm567, %v565
          %vm569 = vcmask 589824
          %570 = vst.msk [vmem:[#allocation6 + $0x8] sm:$0x1] %vm569, %v566
        $region68: #{tpu_custom_call.1} parent=59 // pred_fallthru
          _
        %p571 = scmp.eq.s32.totalorder %s31, 1
        // Predicated region
        $region73: #{tpu_custom_call.1} parent=59 // pred_check
          %p572 = pneg %p571
        $region74: #{tpu_custom_call.1} parent=59 // pred_check_branch
          %574 = sbr.rel (%p572) target = $region76
        $region75: #{tpu_custom_call.1} parent=59 // pred_region
          %p575 = scmp.eq.s32.totalorder %s32, 0
          // Predicated region
          $region77: #{tpu_custom_call.1} parent=75 // pred_check
            %p576 = pneg %p575
          $region78: #{tpu_custom_call.1} parent=75 // pred_check_branch
            %578 = sbr.rel (%p576) target = $region80
          $region79: #{tpu_custom_call.1} parent=75 // pred_region
            %v579 = vld [vmem:[%s2] sm:$0xff]
            %v580 = vld [vmem:[#allocation2] sm:$0xff]
            %v581 = vld [vmem:[#allocation2 + $0x8] sm:$0xff]
            %583 = vset.pattern.permute.xlu0 0
            %584 = vperm.xlu0 %583, %v580
            %v585 = vpop.permute.xlu0 %584
            %v587 = vmul.f32 %v579, %v585
            %vm588 = vcmask 31744
            %v589 = vsel %vm588, %v587, 0.0
            %v590 = vrot.slane %v589, 4
            %v591 = vadd.f32 %v589, %v590
            %v592 = vrot.slane %v591, 2
            %v593 = vadd.f32 %v591, %v592
            %v594 = vrot.slane %v593, 1
            %v595 = vadd.f32 %v593, %v594
            %v596 = vmul.f32 %v595, 0.0009765625
            %598 = vset.pattern.permute.xlu0 0
            %599 = vperm.xlu0 %598, %v581
            %v600 = vpop.permute.xlu0 %599
            %v602 = vmul.f32 %v579, %v600
            %v603 = vsel %vm588, %v602, 0.0
            %v604 = vrot.slane %v603, 4
            %v605 = vadd.f32 %v603, %v604
            %v606 = vrot.slane %v605, 2
            %v607 = vadd.f32 %v605, %v606
            %v608 = vrot.slane %v607, 1
            %v609 = vadd.f32 %v607, %v608
            %v610 = vmul.f32 %v609, 0.0009765625
            %v611 = vmul.f32 %v596, %v596
            %v612 = vsub.f32 %v610, %v611
            %v613 = vmax.f32 %v612, 0.0
            %v614 = vmul.f32 %v579, %v596
            %v615 = vsel %vm588, %v614, 0.0
            %616 = vadd.xlane.f32.xlu0 %v615
            %v617 = vpop.xlane.xlu0 %616
            %v618 = vmul.f32 %v579, %v613
            %v619 = vsel %vm588, %v618, 0.0
            %620 = vadd.xlane.f32.xlu0 %v619
            %v621 = vpop.xlane.xlu0 %620
            %v622 = vadd.f32 %v621, 1e-05
            %v623 = vrsqrt.pop %v622
            %v624 = vmul.f32 %v623, %v622
            %v625 = vmul.f32 %v624, %v623
            %v626 = vmul.f32 0.5, %v625
            %v627 = vsub.f32 1.5, %v626
            %v628 = vmul.f32 %v623, %v627
            %vm629 = vweird.f32 %v622
            %vm630 = vweird.f32 %v623
            %vm631 = vmor %vm629, %vm630
            %v632 = vsel %vm631, %v623, %v628
            %v633 = vld [vmem:[%s6] sm:$0xff]
            %v634 = vmul.f32 %v632, %v633
            %vm635 = vcmask 7168
            %636 = vst.msk [vmem:[#allocation3] sm:$0xff] %vm635, %v634
            %v637 = vld [vmem:[%s7] sm:$0xff]
            %v638 = vmul.f32 %v617, %v634
            %v639 = vsub.f32 %v637, %v638
            %640 = vst.msk [vmem:[#allocation4] sm:$0xff] %vm635, %v639
          $region80: #{tpu_custom_call.1} parent=75 // pred_fallthru
            _
          %v641 = vld [vmem:[%s3] sm:$0xf]
          %v642 = vld [vmem:[%s5] sm:$0xff]
          %644 = vset.pattern.permute.xlu0 0
          %645 = vperm.xlu0 %644, %v642
          %v646 = vpop.permute.xlu0 %645
          %vm648 = vcmask 31744
          %v650 = vsel %vm648, %v641, 0
          %vm652 = vcmask 1041408
          %v654 = vsel %vm652, %v414, 0
          %656 = vmatpush.bf16.msra.mxu0 0
          %657 = vmatpush.bf16.msra.mxu0 0
          %658 = vmatpush.bf16.msra.mxu0 0
          %659 = vmatpush.bf16.msra.mxu0 0
          %660 = vmatpush.bf16.msra.mxu0 0
          %661 = vmatpush.bf16.msra.mxu0 0
          %662 = vmatpush.bf16.msra.mxu0 0
          %663 = vmatpush.bf16.msra.mxu0 %v654
          %664 = vmatmul.bf16.gmra.mxu0 %v650
          %v665 = vpop.f32.mrf.mxu0
          %v666 = vadd.f32 %v646, %v665
          %v667 = vpop.f32.mrf.mxu0
          %668 = vdwg.mxu0
          %v669 = vld [vmem:[#allocation3] sm:$0xff]
          %671 = vset.pattern.permute.xlu0 0
          %672 = vperm.xlu0 %671, %v669
          %v673 = vpop.permute.xlu0 %672
          %v675 = vmul.f32 %v666, %v673
          %v676 = vld [vmem:[#allocation4] sm:$0xff]
          %678 = vset.pattern.permute.xlu0 0
          %679 = vperm.xlu0 %678, %v676
          %v680 = vpop.permute.xlu0 %679
          %v682 = vadd.f32 %v675, %v680
          %v683 = vmax.f32 %v682, 0.0
          %s684 = smul.u32 %s32, 128
          %s685 = sshra.s32 %s684, 7
          %s686 = sand.u32 %s684, 127
          %s687 = smul.addr %s685, 4
          %s688 = scalar_lea.vmem [#allocation7], %s687
          %v689 = vld [vmem:[%s688] sm:$0xf]
          %v690 = vld [vmem:[%s688 + $0x10] sm:$0xf]
          %v691 = vld [vmem:[%s688 + $0x20] sm:$0xf]
          %v692 = vld [vmem:[%s688 + $0x30] sm:$0xf]
          %v693 = vld [vmem:[%s688 + $0x40] sm:$0xf]
          %v694 = vld [vmem:[%s688 + $0x50] sm:$0xf]
          %v695 = vld [vmem:[%s688 + $0x60] sm:$0xf]
          %v696 = vld [vmem:[%s688 + $0x70] sm:$0xf]
          %v697 = vld [vmem:[%s688 + $0x80] sm:$0xf]
          %v698 = vld [vmem:[%s688 + $0x90] sm:$0x1]
          %v699 = vld [vmem:[#allocation5] sm:$0xff]
          %v700 = vpack.c.bf16 %v683, %v683
          %v711 = vunpack.c.l.b16 %v689
          %v712 = vunpack.c.l.b16 %v690
          %v713 = vunpack.c.l.b16 %v691
          %v714 = vunpack.c.l.b16 %v692
          %v715 = vunpack.c.l.b16 %v693
          %v716 = vunpack.c.l.b16 %v694
          %v717 = vunpack.c.l.b16 %v695
          %v718 = vunpack.c.l.b16 %v696
          %v719 = vunpack.c.l.b16 %v697
          %v720 = vunpack.c.l.b16 %v698
          %v721 = vpack.c.b16 %v712, %v711
          %v722 = vpack.c.b16 %v714, %v713
          %v723 = vpack.c.b16 %v716, %v715
          %v724 = vpack.c.b16 %v718, %v717
          %v725 = vpack.c.b16 %v720, %v719
          %731 = vmatpush.bf16.xpose.msra.mxu0 0
          %732 = vmatpush.bf16.xpose.msra.mxu0 0
          %733 = vmatpush.bf16.xpose.msra.mxu0 0
          %734 = vmatpush.bf16.xpose.msra.mxu0 %v725
          %735 = vmatpush.bf16.xpose.msra.mxu0 %v724
          %736 = vmatpush.bf16.xpose.msra.mxu0 %v723
          %737 = vmatpush.bf16.xpose.msra.mxu0 %v722
          %738 = vmatpush.bf16.xpose.msra.mxu0 %v721
          %739 = vmatmul.bf16.gmra.mxu0 %v700
          %v740 = vpop.f32.mrf.mxu0
          %v741 = vadd.f32 0.0, %v740
          %v742 = vpop.f32.mrf.mxu0
          %743 = vdwg.mxu0
          %v744 = vadd.f32 %v699, %v741
          %vm745 = vcmask 596992
          %746 = vst.msk [vmem:[#allocation5] sm:$0xff] %vm745, %v744
        $region76: #{tpu_custom_call.1} parent=59 // pred_fallthru
          _
        %p747 = scmp.eq.s32.totalorder %s31, 2
        // Predicated region
        $region81: #{tpu_custom_call.1} parent=59 // pred_check
          %p748 = pneg %p747
        $region82: #{tpu_custom_call.1} parent=59 // pred_check_branch
          %750 = sbr.rel (%p748) target = $region84
        $region83: #{tpu_custom_call.1} parent=59 // pred_region
          %p751 = scmp.eq.s32.totalorder %s32, 0
          // Predicated region
          $region85: #{tpu_custom_call.1} parent=83 // pred_check
            %p752 = pneg %p751
          $region86: #{tpu_custom_call.1} parent=83 // pred_check_branch
            %754 = sbr.rel (%p752) target = $region88
          $region87: #{tpu_custom_call.1} parent=83 // pred_region
            %v755 = vld [vmem:[#allocation5] sm:$0xff]
            %v756 = vmul.f32 %v755, 0.35355338
            %vm757 = vcmask 596992
            %758 = vst.msk [vmem:[#allocation5] sm:$0xff] %vm757, %v756
          $region88: #{tpu_custom_call.1} parent=83 // pred_fallthru
            _
          %v759 = vld [vmem:[%s3] sm:$0xf]
          %v760 = vld [vmem:[%s5] sm:$0xff]
          %762 = vset.pattern.permute.xlu0 0
          %763 = vperm.xlu0 %762, %v760
          %v764 = vpop.permute.xlu0 %763
          %vm766 = vcmask 31744
          %v768 = vsel %vm766, %v759, 0
          %vm770 = vcmask 1041408
          %v772 = vsel %vm770, %v414, 0
          %774 = vmatpush.bf16.msra.mxu0 0
          %775 = vmatpush.bf16.msra.mxu0 0
          %776 = vmatpush.bf16.msra.mxu0 0
          %777 = vmatpush.bf16.msra.mxu0 0
          %778 = vmatpush.bf16.msra.mxu0 0
          %779 = vmatpush.bf16.msra.mxu0 0
          %780 = vmatpush.bf16.msra.mxu0 0
          %781 = vmatpush.bf16.msra.mxu0 %v772
          %782 = vmatmul.bf16.gmra.mxu0 %v768
          %v783 = vpop.f32.mrf.mxu0
          %v784 = vadd.f32 %v764, %v783
          %v785 = vpop.f32.mrf.mxu0
          %786 = vdwg.mxu0
          %v787 = vld [vmem:[#allocation3] sm:$0xff]
          %789 = vset.pattern.permute.xlu0 0
          %790 = vperm.xlu0 %789, %v787
          %v791 = vpop.permute.xlu0 %790
          %v793 = vmul.f32 %v784, %v791
          %v794 = vld [vmem:[#allocation4] sm:$0xff]
          %796 = vset.pattern.permute.xlu0 0
          %797 = vperm.xlu0 %796, %v794
          %v798 = vpop.permute.xlu0 %797
          %v800 = vadd.f32 %v793, %v798
          %v801 = vmax.f32 %v800, 0.0
          %v802 = vpack.c.bf16 %v801, %v801
          %v803 = vld [vmem:[#allocation5] sm:$0xff]
          %v804 = vpack.c.bf16 %v803, %v803
          %805 = vxpose.xlu0.c.b16.start [1/8] %v804, 128
          %806 = vxpose.xlu0.c.b16.cont [2/8] 0, 128
          %807 = vxpose.xlu0.c.b16.cont [3/8] 0, 128
          %808 = vxpose.xlu0.c.b16.cont [4/8] 0, 128
          %809 = vxpose.xlu0.c.b16.cont [5/8] 0, 128
          %810 = vxpose.xlu0.c.b16.cont [6/8] 0, 128
          %811 = vxpose.xlu0.c.b16.cont [7/8] 0, 128
          %812 = vxpose.xlu0.c.b16.end [8/8] 0, 128
          %v813 = vpop.trf.xlu0
          %v814 = vpop.trf.xlu0
          %v815 = vpop.trf.xlu0
          %v816 = vpop.trf.xlu0
          %v817 = vpop.trf.xlu0
          %v818 = vpop.trf.xlu0
          %v819 = vpop.trf.xlu0
          %v820 = vpop.trf.xlu0
          %vm821 = vcmask 64512
          %v823 = vsel %vm821, %v813, 0
          %v826 = vsel %vm821, %v814, 0
          %v829 = vsel %vm821, %v815, 0
          %v832 = vsel %vm821, %v816, 0
          %v835 = vsel %vm821, %v817, 0
          %vm837 = vcmask 1043456
          %v839 = vsel %vm837, %v802, 0
          %841 = vmatpush.bf16.msra.mxu0 0
          %842 = vmatpush.bf16.msra.mxu0 0
          %843 = vmatpush.bf16.msra.mxu0 0
          %844 = vmatpush.bf16.msra.mxu0 0
          %845 = vmatpush.bf16.msra.mxu0 0
          %846 = vmatpush.bf16.msra.mxu0 0
          %847 = vmatpush.bf16.msra.mxu0 0
          %848 = vmatpush.bf16.msra.mxu0 %v839
          %849 = vmatmul.bf16.gmra.mxu0 %v823
          %v850 = vpop.f32.mrf.mxu0
          %v851 = vadd.f32 0.0, %v850
          %v852 = vpop.f32.mrf.mxu0
          %v853 = vadd.f32 0.0, %v852
          %854 = vmatmul.bf16.gmra.mxu0 %v826
          %v855 = vpop.f32.mrf.mxu0
          %v856 = vadd.f32 0.0, %v855
          %v857 = vpop.f32.mrf.mxu0
          %v858 = vadd.f32 0.0, %v857
          %859 = vmatmul.bf16.gmra.mxu0 %v829
          %v860 = vpop.f32.mrf.mxu0
          %v861 = vadd.f32 0.0, %v860
          %v862 = vpop.f32.mrf.mxu0
          %v863 = vadd.f32 0.0, %v862
          %864 = vmatmul.bf16.gmra.mxu0 %v832
          %v865 = vpop.f32.mrf.mxu0
          %v866 = vadd.f32 0.0, %v865
          %v867 = vpop.f32.mrf.mxu0
          %v868 = vadd.f32 0.0, %v867
          %869 = vmatmul.bf16.gmra.mxu0 %v835
          %v870 = vpop.f32.mrf.mxu0
          %v871 = vadd.f32 0.0, %v870
          %v872 = vpop.f32.mrf.mxu0
          %v873 = vadd.f32 0.0, %v872
          %874 = vdwg.mxu0
          %v875 = vmax.f32 %v851, %v861
          %v876 = vmax.f32 %v853, %v863
          %v877 = vmax.f32 %v856, %v866
          %v878 = vmax.f32 %v858, %v868
          %v879 = vmax.f32 %v875, %v871
          %vm880 = vcmask 1040384
          %v881 = vsel %vm880, %v873, -inf
          %v882 = vmax.f32 %v876, %v881
          %v883 = vmax.f32 %v879, %v882
          %v884 = vmax.f32 %v877, %v878
          %v885 = vmax.f32 %v883, %v884
          %v886 = vrot.slane %v885, 4
          %v887 = vmax.f32 %v885, %v886
          %v888 = vrot.slane %v887, 2
          %v889 = vmax.f32 %v887, %v888
          %v890 = vrot.slane %v889, 1
          %v891 = vmax.f32 %v889, %v890
          %v892 = vsub.f32 %v851, %v891
          %v893 = vsub.f32 %v853, %v891
          %v894 = vsub.f32 %v856, %v891
          %v895 = vsub.f32 %v858, %v891
          %v896 = vsub.f32 %v861, %v891
          %v897 = vsub.f32 %v863, %v891
          %v898 = vsub.f32 %v866, %v891
          %v899 = vsub.f32 %v868, %v891
          %v900 = vsub.f32 %v871, %v891
          %v901 = vsub.f32 %v873, %v891
          %v902 = vmul.f32 %v892, 1.442695
          %v903 = vpow.pop %v902
          %v904 = vmul.f32 %v893, 1.442695
          %v905 = vpow.pop %v904
          %v906 = vmul.f32 %v894, 1.442695
          %v907 = vpow.pop %v906
          %v908 = vmul.f32 %v895, 1.442695
          %v909 = vpow.pop %v908
          %v910 = vmul.f32 %v896, 1.442695
          %v911 = vpow.pop %v910
          %v912 = vmul.f32 %v897, 1.442695
          %v913 = vpow.pop %v912
          %v914 = vmul.f32 %v898, 1.442695
          %v915 = vpow.pop %v914
          %v916 = vmul.f32 %v899, 1.442695
          %v917 = vpow.pop %v916
          %v918 = vmul.f32 %v900, 1.442695
          %v919 = vpow.pop %v918
          %v920 = vmul.f32 %v901, 1.442695
          %v921 = vpow.pop %v920
          %v922 = vpack.c.bf16 %v905, %v903
          %v923 = vpack.c.bf16 %v909, %v907
          %v924 = vpack.c.bf16 %v913, %v911
          %v925 = vpack.c.bf16 %v917, %v915
          %v926 = vpack.c.bf16 %v921, %v919
          %v927 = vld [vmem:[#allocation6] sm:$0xff]
          %v928 = vld [vmem:[#allocation6 + $0x8] sm:$0x1]
          %v929 = vpack.c.bf16 %v928, %v927
          %vm930 = vcmask 596992
          %v932 = vsel %vm930, %v929, 0
          %vm934 = vcmask 1044480
          %v935 = vsel %vm837, 4294967295, 65535
          %v936 = vsel %vm934, %v935, 0
          %v938 = vand.u32 %v926, %v936
          %940 = vmatpush.bf16.msra.mxu0 0
          %941 = vmatpush.bf16.msra.mxu0 0
          %942 = vmatpush.bf16.msra.mxu0 0
          %943 = vmatpush.bf16.msra.mxu0 %v938
          %944 = vmatpush.bf16.msra.mxu0 %v925
          %945 = vmatpush.bf16.msra.mxu0 %v924
          %946 = vmatpush.bf16.msra.mxu0 %v923
          %947 = vmatpush.bf16.msra.mxu0 %v922
          %948 = vmatmul.bf16.gmra.mxu0 %v932
          %v949 = vpop.f32.mrf.mxu0
          %v950 = vadd.f32 0.0, %v949
          %v951 = vpop.f32.mrf.mxu0
          %v952 = vadd.f32 0.0, %v951
          %953 = vdwg.mxu0
          %v954 = vrcp.pop %v952
          %v955 = vperm.slane %v954, 0
          %v956 = vmul.f32 %v950, %v955
          %v957 = vld [vmem:[%s8] sm:$0x3]
          %v958 = vpack.c.bf16 %v956, %v956
          %v959 = vld [vmem:[%s9] sm:$0xf]
          %961 = vset.pattern.permute.xlu0 0
          %962 = vperm.xlu0 %961, %v959
          %v963 = vpop.permute.xlu0 %962
          %v966 = vsel %vm821, %v957, 0
          %v969 = vsel %vm837, %v958, 0
          %971 = vmatpush.bf16.msra.mxu0 0
          %972 = vmatpush.bf16.msra.mxu0 0
          %973 = vmatpush.bf16.msra.mxu0 0
          %974 = vmatpush.bf16.msra.mxu0 0
          %975 = vmatpush.bf16.msra.mxu0 0
          %976 = vmatpush.bf16.msra.mxu0 0
          %977 = vmatpush.bf16.msra.mxu0 0
          %978 = vmatpush.bf16.msra.mxu0 %v969
          %979 = vmatmul.bf16.gmra.mxu0 %v966
          %v980 = vpop.f32.mrf.mxu0
          %v981 = vadd.f32 %v963, %v980
          %v982 = vpop.f32.mrf.mxu0
          %983 = vdwg.mxu0
          %984 = vst [vmem:[%s402] sm:$0xf] %v981
        $region84: #{tpu_custom_call.1} parent=59 // pred_fallthru
          _
        %s985 = sand.u32 %s275, 1
        %s986 = scalar_lea.sflag [#allocation9], %s985
        %s987 = sand.u32 %s275, 1
        %s988 = smul.addr %s987, 4
        %s989 = scalar_lea.vmem [#allocation10], %s988
        // Predicated region
        $region89: #{tpu_custom_call.1} parent=59 // pred_check
          %p990 = pneg %p285
        $region90: #{tpu_custom_call.1} parent=59 // pred_check_branch
          %992 = sbr.rel (%p990) target = $region92
        $region91: #{tpu_custom_call.1} parent=59 // pred_region
          %p993 = scmp.eq.s32.totalorder %s31, 2
          %s994 = scalar_select %p993, %s32, 0
          %996 = vsyncadd %s986, 0
          %s997 = smul.addr %s30, 4
          %s998 = sadd.s32 %s994, %s997
          %s999 = smul.addr %s998, 4
          %s1000 = scalar_lea.hbm %s10, %s999
          %s1002 = sshll.u32 %s989, 4
          %s1003 = int_to_ptr.vmem [resolvable:$true] %s1002
          %s1004 = sshll.u32 %s1000, 4
          %s1005 = int_to_ptr.hbm [resolvable:$true] %s1004
          %1007 = dma.vmem_to_hbm [thread:$0]  %s1003, 64, %s1005, %s986
        $region92: #{tpu_custom_call.1} parent=59 // pred_fallthru
          _
      $region60: #{tpu_custom_call.1} parent=5 // pred_fallthru
        _
      %p1008 = scmp.le.s32.totalorder 2, %s20
      // Predicated region
      $region93: #{tpu_custom_call.1} parent=5 // pred_check
        %p1009 = pneg %p1008
      $region94: #{tpu_custom_call.1} parent=5 // pred_check_branch
        %1011 = sbr.rel (%p1009) target = $region96
      $region95: #{tpu_custom_call.1} parent=5 // pred_region
        %s1012 = ssub.s32 %s20, 2
        // Predicated region
        $region97: #{tpu_custom_call.1} parent=95 // pred_check
          %p1013 = pneg %p291
        $region98: #{tpu_custom_call.1} parent=95 // pred_check_branch
          %1015 = sbr.rel (%p1013) target = $region100
        $region99: #{tpu_custom_call.1} parent=95 // pred_region
          %s1016 = sand.u32 %s276, 1
          %s1017 = scalar_lea.sflag [#allocation9], %s1016
          %s1018 = sand.u32 %s276, 1
          %s1019 = smul.addr %s1018, 4
          %s1020 = scalar_lea.vmem [#allocation10], %s1019
          %1022 = dma.done %s1017, 64
        $region100: #{tpu_custom_call.1} parent=95 // pred_fallthru
          _
      $region96: #{tpu_custom_call.1} parent=5 // pred_fallthru
        _
    $region6: #{tpu_custom_call.1} parent=1 // loop_footer
      %s24 = sadd.s32 1, %s20
    $region7: #{tpu_custom_call.1} parent=1 // loop_footer_branch
      %19 = sbr.rel target = $region3
    $region8: #{tpu_custom_call.1} parent=1 // loop_exit
      _
    %1023 = vsyncpa [#allocation8], 1
    %s1024 = scalar_lea.sflag [#allocation8], 1
    %1025 = vsyncpa %s1024, 1
    %1026 = vsyncpa [#allocation9], 1
    %s1027 = scalar_lea.sflag [#allocation9], 1
    %1028 = vsyncpa %s1027, 1

</llo_original>
